<compile_context>
chip_gen: v6e
topology: v6e:2x2x1
jax: 0.10.0
libtpu: 0.0.40
codegen_flags: <defaults>
</compile_context>

<pallas_src>
import jax
import jax.numpy as jnp
from jax.experimental import pallas as pl
from jax.experimental.pallas import tpu as pltpu


def code2vec_kernel(ctx_ref, amask_ref, win_ref, watt_ref, wout_ref, bout_ref,
                    o_ref, code_ref):
    # ctx_ref  : (TB, C, D) f32  context embeddings for TB batch elements
    # amask_ref: (TB, C)    f32  additive mask (0 valid / -1e30 masked) + b_att
    # win_ref  : (D, D)          input_linear weight (x @ W layout), compute dtype
    # watt_ref : (1, D)     f32  attention weight as a lane-dense row
    # wout_ref : (D, TN)         output_linear weight tile, compute dtype
    # bout_ref : (1, TN)    f32  output_linear bias tile
    # o_ref    : (TB, TN)   f32  logits tile
    # code_ref : (TB, D)    f32  scratch: attention-pooled code vectors,
    #                            persists across the T grid axis
    tb, c, d = ctx_ref.shape

    @pl.when(pl.program_id(1) == 0)
    def _compute_code():
        # Fold (TB, C) -> TB*C rows so the MXU sees a full-height matmul.
        # (Cast to the weight compute dtype here; ctx could also be pre-cast on
        #  the host to additionally halve its DMA bytes.)
        ctx = ctx_ref[...].reshape(tb * c, d).astype(win_ref.dtype)

        # input_linear (no bias) + tanh  -- MXU matmul, f32 accumulation.
        h = jnp.tanh(jnp.dot(ctx, win_ref[...],
                             preferred_element_type=jnp.float32))      # (TB*C, D) f32
        h3 = h.reshape(tb, c, d)                                        # (TB, C, D)

        # Attention scores on VPU (multiply) + XLU (lane reduce), not an
        # N=1 MXU matmul.  b_att is already folded into the additive mask.
        w_row = watt_ref[...].reshape(1, 1, d)                          # (1, 1, D)
        scores = jnp.sum(h3 * w_row, axis=-1) + amask_ref[...]          # (TB, C)

        # Softmax over contexts (last axis), normalization via EUP reciprocal.
        m = jnp.max(scores, axis=-1, keepdims=True)
        e = jnp.exp(scores - m)
        attn = e * pl.reciprocal(jnp.sum(e, axis=-1, keepdims=True),
                                 approx=True)                           # (TB, C)

        # Attention-weighted sum of context vectors.
        code_ref[...] = jnp.sum(h3 * attn[:, :, None], axis=1)          # (TB, D) f32

    # Output projection for this T tile (code is reused across T tiles).
    code = code_ref[...].astype(wout_ref.dtype)
    o_ref[...] = (jnp.dot(code, wout_ref[...],
                          preferred_element_type=jnp.float32)
                  + bout_ref[...])


def code2vec_forward(ctx_embed, mask, W_in, w_att, b_att, W_out, b_out, *,
                     tb=16, tn=None, compute_dtype=jnp.float32):
    """Pallas Code2Vec forward.  ctx_embed: [B, C, D], mask: [B, C] in {0,1}."""
    B, C, D = ctx_embed.shape
    T = W_out.shape[1]
    assert tb % 8 == 0, "batch tile must be a multiple of 8 sublanes"
    if tn is None:
        tn = T if T <= 2048 else 2048     # tile T for v7x's smaller scoped VMEM
    if T % tn != 0:
        tn = T

    # Pad the batch to a multiple of tb; padded rows are fully masked (additive
    # mask -1e30 everywhere -> finite garbage, no NaN) and dropped at the end.
    Bp = pl.cdiv(B, tb) * tb
    if Bp != B:
        ctx_embed = jnp.pad(ctx_embed, ((0, Bp - B), (0, 0), (0, 0)))
        mask = jnp.pad(mask, ((0, Bp - B), (0, 0)))

    # Additive mask instead of in-kernel log(mask).  b_att is uniform over the
    # context axis (softmax-invariant), so folding it here is exact.
    amask = (jnp.where(mask > 0, 0.0, -1e30)
             + b_att.reshape(1, 1)).astype(jnp.float32)

    ctx_f32 = ctx_embed.astype(jnp.float32)
    W_in_c = W_in.astype(compute_dtype)
    W_out_c = W_out.astype(compute_dtype)
    w_att_row = w_att.reshape(1, D).astype(jnp.float32)
    b_out2 = b_out.reshape(1, T).astype(jnp.float32)

    grid = (Bp // tb, T // tn)
    out = pl.pallas_call(
        code2vec_kernel,
        out_shape=jax.ShapeDtypeStruct((Bp, T), jnp.float32),
        grid_spec=pltpu.PrefetchScalarGridSpec(
            num_scalar_prefetch=0,
            grid=grid,
            in_specs=[
                pl.BlockSpec((tb, C, D), lambda b, t: (b, 0, 0)),   # ctx embeddings
                pl.BlockSpec((tb, C),    lambda b, t: (b, 0)),      # additive mask
                pl.BlockSpec((D, D),     lambda b, t: (0, 0)),      # W_in (resident)
                pl.BlockSpec((1, D),     lambda b, t: (0, 0)),      # w_att row
                pl.BlockSpec((D, tn),    lambda b, t: (0, t)),      # W_out tile
                pl.BlockSpec((1, tn),    lambda b, t: (0, t)),      # b_out tile
            ],
            out_specs=pl.BlockSpec((tb, tn), lambda b, t: (b, t)),
            scratch_shapes=[pltpu.VMEM((tb, D), jnp.float32)],      # pooled code
        ),
        compiler_params=pltpu.CompilerParams(
            dimension_semantics=("parallel", "arbitrary")),
    )(ctx_f32, amask, W_in_c, w_att_row, W_out_c, b_out2)
    return out[:B]


def reference_forward(ctx_embed, mask, W_in, w_att, b_att, W_out, b_out,
                      compute_dtype=jnp.float32):
    B, C, D = ctx_embed.shape
    ctx = ctx_embed.reshape(-1, D).astype(compute_dtype)
    h = jnp.tanh(jnp.dot(ctx, W_in.astype(compute_dtype),
                         preferred_element_type=jnp.float32))
    scores = (h @ w_att + b_att).reshape(B, C, 1)
    scores = scores + jnp.log(mask)[:, :, None]
    attn = jax.nn.softmax(scores, axis=1)
    code = jnp.sum(h.reshape(B, C, D) * attn, axis=1)
    return jnp.dot(code.astype(compute_dtype), W_out.astype(compute_dtype),
                   preferred_element_type=jnp.float32) + b_out


if __name__ == "__main__":
    # Small config consistent with the module's __init__.
    B = 32                   # batch (2 tiles of TB=16 -> both megacore TCs get work)
    C = 8                    # max_contexts
    TOKEN_DIM = 48           # token_embedding_dim
    PATH_DIM = 32            # path_embedding_dim
    D = 2 * TOKEN_DIM + PATH_DIM   # context_vector_size = 128
    TOKEN_VOCAB = 50
    PATH_VOCAB = 40
    TARGET_VOCAB = 128       # target vocab size T

    key = jax.random.PRNGKey(0)
    keys = jax.random.split(key, 10)

    # Deterministic synthetic parameters (no checkpoint loading).
    token_embedding = jax.random.normal(keys[0], (TOKEN_VOCAB, TOKEN_DIM), jnp.float32) * 0.1
    path_embedding = jax.random.normal(keys[1], (PATH_VOCAB, PATH_DIM), jnp.float32) * 0.1
    W_in = jax.random.normal(keys[2], (D, D), jnp.float32) * 0.05              # input_linear.weight.T
    w_att = jax.random.normal(keys[3], (D, 1), jnp.float32) * 0.05             # attention.weight.T
    b_att = jax.random.normal(keys[4], (1,), jnp.float32) * 0.05               # attention.bias
    W_out = jax.random.normal(keys[5], (D, TARGET_VOCAB), jnp.float32) * 0.05  # output_linear.weight.T
    b_out = jax.random.normal(keys[6], (TARGET_VOCAB,), jnp.float32) * 0.05    # output_linear.bias

    # Deterministic synthetic inputs.
    source_token_indices = jax.random.randint(keys[7], (B, C), 0, TOKEN_VOCAB)
    path_indices = jax.random.randint(keys[8], (B, C), 0, PATH_VOCAB)
    target_token_indices = jax.random.randint(keys[9], (B, C), 0, TOKEN_VOCAB)
    # Valid mask: varying number of valid contexts per row (at least one valid).
    n_valid = 1 + (jnp.arange(B) % C)
    context_valid_mask = (jnp.arange(C)[None, :] < n_valid[:, None]).astype(jnp.float32)

    # Glue: embedding lookups + concat (gather stays in plain JAX).
    src_embed = jnp.take(token_embedding, source_token_indices, axis=0)     # [B, C, TOKEN_DIM]
    path_embed = jnp.take(path_embedding, path_indices, axis=0)             # [B, C, PATH_DIM]
    tgt_embed = jnp.take(token_embedding, target_token_indices, axis=0)     # [B, C, TOKEN_DIM]
    ctx_embed = jnp.concatenate([src_embed, path_embed, tgt_embed], axis=-1)  # [B, C, D]
    # TODO(synk): input_dropout is identity in eval mode; training-mode dropout not implemented.

    # f32 path (v5e-friendly, TB*C = 128-row MXU tiles).
    logits = code2vec_forward(ctx_embed, context_valid_mask,
                              W_in, w_att, b_att, W_out, b_out,
                              tb=16, compute_dtype=jnp.float32)
    logits = jax.block_until_ready(logits)
    ref = reference_forward(ctx_embed, context_valid_mask,
                            W_in, w_att, b_att, W_out, b_out,
                            compute_dtype=jnp.float32)
    assert logits.shape == (B, TARGET_VOCAB)
    assert jnp.allclose(logits, ref, atol=1e-3, rtol=1e-3), "f32 mismatch vs reference"

    # bf16-MXU path (v6e / v7x): bf16 matmul inputs, f32 accumulation.
    logits_bf16 = code2vec_forward(ctx_embed, context_valid_mask,
                                   W_in, w_att, b_att, W_out, b_out,
                                   tb=16, compute_dtype=jnp.bfloat16)
    logits_bf16 = jax.block_until_ready(logits_bf16)
    ref_bf16 = reference_forward(ctx_embed, context_valid_mask,
                                 W_in, w_att, b_att, W_out, b_out,
                                 compute_dtype=jnp.bfloat16)
    assert jnp.allclose(logits_bf16, ref_bf16, atol=5e-3, rtol=5e-3), "bf16 mismatch vs reference"

    print("KERNEL_OK")
</pallas_src>

<mosaic_0001>
module attributes {stable_mosaic.version = 11 : i64} {
  func.func @code2vec_kernel(%arg0: i32, %arg1: i32, %arg2: memref<16x8x128xf32, #tpu.memory_space<vmem>>, %arg3: memref<16x8xf32, #tpu.memory_space<vmem>>, %arg4: memref<128x128xf32, #tpu.memory_space<vmem>>, %arg5: memref<1x128xf32, #tpu.memory_space<vmem>>, %arg6: memref<128x128xf32, #tpu.memory_space<vmem>>, %arg7: memref<1x128xf32, #tpu.memory_space<vmem>>, %arg8: memref<16x128xf32, #tpu.memory_space<vmem>>, %arg9: memref<16x128xf32, #tpu.memory_space<vmem>>) attributes {dimension_semantics = [#tpu.dimension_semantics<parallel>, #tpu.dimension_semantics<arbitrary>], iteration_bounds = array<i64: 2, 1>, scalar_prefetch = 0 : i64, scratch_operands = 1 : i64, tpu.core_type = #tpu.core_type<tc>, window_params = [{transform_indices = @transform_0, window_bounds = array<i64: 16, 8, 128>}, {transform_indices = @transform_1, window_bounds = array<i64: 16, 8>}, {pipeline_mode = #tpu.pipeline_mode<synchronous>, transform_indices = @transform_2, window_bounds = array<i64: 128, 128>}, {pipeline_mode = #tpu.pipeline_mode<synchronous>, transform_indices = @transform_3, window_bounds = array<i64: 1, 128>}, {transform_indices = @transform_4, window_bounds = array<i64: 128, 128>}, {transform_indices = @transform_5, window_bounds = array<i64: 1, 128>}, {transform_indices = @transform_6, window_bounds = array<i64: 16, 128>}]} {
    %c0_i32 = arith.constant 0 : i32
    %0 = arith.cmpi eq, %arg1, %c0_i32 : i32
    %1 = arith.extui %0 : i1 to i32
    %c0_i32_0 = arith.constant 0 : i32
    %2 = arith.cmpi ne, %1, %c0_i32_0 : i32
    scf.if %2 {
      %c0_8 = arith.constant 0 : index
      %c0_9 = arith.constant 0 : index
      %c0_10 = arith.constant 0 : index
      %10 = vector.load %arg2[%c0_8, %c0_9, %c0_10] : memref<16x8x128xf32, #tpu.memory_space<vmem>>, vector<16x8x128xf32>
      %11 = vector.shape_cast %10 : vector<16x8x128xf32> to vector<128x128xf32>
      %c0_11 = arith.constant 0 : index
      %c0_12 = arith.constant 0 : index
      %12 = vector.load %arg4[%c0_11, %c0_12] : memref<128x128xf32, #tpu.memory_space<vmem>>, vector<128x128xf32>
      %cst_13 = arith.constant dense<0.000000e+00> : vector<128x128xf32>
      %13 = tpu.matmul %11, %12, %cst_13 {dimension_numbers = #tpu.dot_dimension_numbers<[1], [0], [0], [1], [0, 0, 1, 1], [], []>} : vector<128x128xf32>, vector<128x128xf32>, vector<128x128xf32> -> vector<128x128xf32>
      %14 = math.tanh %13 : vector<128x128xf32>
      %15 = vector.shape_cast %14 : vector<128x128xf32> to vector<16x8x128xf32>
      %c0_14 = arith.constant 0 : index
      %c0_15 = arith.constant 0 : index
      %16 = vector.load %arg5[%c0_14, %c0_15] : memref<1x128xf32, #tpu.memory_space<vmem>>, vector<1x128xf32>
      %17 = vector.shape_cast %16 : vector<1x128xf32> to vector<1x1x128xf32>
      %18 = vector.broadcast %17 : vector<1x1x128xf32> to vector<16x8x128xf32>
      %19 = arith.mulf %15, %18 : vector<16x8x128xf32>
      %cst_16 = arith.constant dense<0.000000e+00> : vector<16x8xf32>
      %20 = vector.multi_reduction <add>, %19, %cst_16 [2] : vector<16x8x128xf32> to vector<16x8xf32>
      %c0_17 = arith.constant 0 : index
      %c0_18 = arith.constant 0 : index
      %21 = vector.load %arg3[%c0_17, %c0_18] : memref<16x8xf32, #tpu.memory_space<vmem>>, vector<16x8xf32>
      %22 = arith.addf %20, %21 : vector<16x8xf32>
      %cst_19 = arith.constant dense<0xFF800000> : vector<16xf32>
      %23 = vector.multi_reduction <maximumf>, %22, %cst_19 [1] : vector<16x8xf32> to vector<16xf32>
      %24 = vector.shape_cast %23 : vector<16xf32> to vector<16x1xf32>
      %25 = vector.broadcast %24 : vector<16x1xf32> to vector<16x8xf32>
      %26 = arith.subf %22, %25 : vector<16x8xf32>
      %27 = math.exp %26 : vector<16x8xf32>
      %cst_20 = arith.constant dense<0.000000e+00> : vector<16xf32>
      %28 = vector.multi_reduction <add>, %27, %cst_20 [1] : vector<16x8xf32> to vector<16xf32>
      %29 = vector.shape_cast %28 : vector<16xf32> to vector<16x1xf32>
      %30 = tpu.reciprocal %29 {approx = true} : vector<16x1xf32> -> vector<16x1xf32>
      %31 = vector.broadcast %30 : vector<16x1xf32> to vector<16x8xf32>
      %32 = arith.mulf %27, %31 : vector<16x8xf32>
      %33 = vector.shape_cast %32 : vector<16x8xf32> to vector<16x8x1xf32>
      %34 = vector.broadcast %33 : vector<16x8x1xf32> to vector<16x8x128xf32>
      %35 = arith.mulf %15, %34 : vector<16x8x128xf32>
      %cst_21 = arith.constant dense<0.000000e+00> : vector<16x128xf32>
      %36 = vector.multi_reduction <add>, %35, %cst_21 [1] : vector<16x8x128xf32> to vector<16x128xf32>
      %c0_22 = arith.constant 0 : index
      %c0_23 = arith.constant 0 : index
      %37 = vector.load %arg9[%c0_22, %c0_23] : memref<16x128xf32, #tpu.memory_space<vmem>>, vector<16x128xf32>
      tpu.vector_store %arg9[%c0_22, %c0_23], %36 {strides = array<i32>} : memref<16x128xf32, #tpu.memory_space<vmem>>, vector<16x128xf32>,
    } else {
    }
    %c0 = arith.constant 0 : index
    %c0_1 = arith.constant 0 : index
    %3 = vector.load %arg9[%c0, %c0_1] : memref<16x128xf32, #tpu.memory_space<vmem>>, vector<16x128xf32>
    %c0_2 = arith.constant 0 : index
    %c0_3 = arith.constant 0 : index
    %4 = vector.load %arg6[%c0_2, %c0_3] : memref<128x128xf32, #tpu.memory_space<vmem>>, vector<128x128xf32>
    %cst = arith.constant dense<0.000000e+00> : vector<16x128xf32>
    %5 = tpu.matmul %3, %4, %cst {dimension_numbers = #tpu.dot_dimension_numbers<[1], [0], [0], [1], [0, 0, 1, 1], [], []>} : vector<16x128xf32>, vector<128x128xf32>, vector<16x128xf32> -> vector<16x128xf32>
    %c0_4 = arith.constant 0 : index
    %c0_5 = arith.constant 0 : index
    %6 = vector.load %arg7[%c0_4, %c0_5] : memref<1x128xf32, #tpu.memory_space<vmem>>, vector<1x128xf32>
    %7 = vector.broadcast %6 : vector<1x128xf32> to vector<16x128xf32>
    %8 = arith.addf %5, %7 : vector<16x128xf32>
    %c0_6 = arith.constant 0 : index
    %c0_7 = arith.constant 0 : index
    %9 = vector.load %arg8[%c0_6, %c0_7] : memref<16x128xf32, #tpu.memory_space<vmem>>, vector<16x128xf32>
    tpu.vector_store %arg8[%c0_6, %c0_7], %8 {strides = array<i32>} : memref<16x128xf32, #tpu.memory_space<vmem>>, vector<16x128xf32>,
    return
  }
  func.func @transform_0(%arg0: i32, %arg1: i32) -> (i32, i32, i32) {
    %c0_i32 = arith.constant 0 : i32
    %c0_i32_0 = arith.constant 0 : i32
    %c0_i32_1 = arith.constant 0 : i32
    return %arg0, %c0_i32, %c0_i32_0 : i32, i32, i32
  }
  func.func @transform_1(%arg0: i32, %arg1: i32) -> (i32, i32) {
    %c0_i32 = arith.constant 0 : i32
    %c0_i32_0 = arith.constant 0 : i32
    return %arg0, %c0_i32 : i32, i32
  }
  func.func @transform_2(%arg0: i32, %arg1: i32) -> (i32, i32) {
    %c0_i32 = arith.constant 0 : i32
    %c0_i32_0 = arith.constant 0 : i32
    %c0_i32_1 = arith.constant 0 : i32
    return %c0_i32, %c0_i32_0 : i32, i32
  }
  func.func @transform_3(%arg0: i32, %arg1: i32) -> (i32, i32) {
    %c0_i32 = arith.constant 0 : i32
    %c0_i32_0 = arith.constant 0 : i32
    %c0_i32_1 = arith.constant 0 : i32
    return %c0_i32, %c0_i32_0 : i32, i32
  }
  func.func @transform_4(%arg0: i32, %arg1: i32) -> (i32, i32) {
    %c0_i32 = arith.constant 0 : i32
    %c0_i32_0 = arith.constant 0 : i32
    return %c0_i32, %arg1 : i32, i32
  }
  func.func @transform_5(%arg0: i32, %arg1: i32) -> (i32, i32) {
    %c0_i32 = arith.constant 0 : i32
    %c0_i32_0 = arith.constant 0 : i32
    return %c0_i32, %arg1 : i32, i32
  }
  func.func @transform_6(%arg0: i32, %arg1: i32) -> (i32, i32) {
    %c0_i32 = arith.constant 0 : i32
    return %arg0, %arg1 : i32, i32
  }
}

</mosaic_0001>

<llo_original>
// kernel: tpu_custom_call.1
$region0: #{tpu_custom_call.1}
  #allocation0 [shape = 'u32[]', space=smem, size = 0x4, offset = 0x4, fixed_abs, tag = 'smem constant byte address 0x4 - core index']
  #allocation1 [shape = 'u32[144,128]{1,0:T(1,128)}', space=vmem, size = 0x12000, scoped, tag = 'internal scratch']
  #allocation2 [shape = 'f32[16,128]{1,0:T(8,128)}', space=vmem, size = 0x2000, scoped, tag = 'scratch operand']
  %s0 = inlined_call_operand.hbm [shape: f32[32,8,128], index: 0, kind: input, shape index: {}]
  %s1 = inlined_call_operand.vmem [shape: f32[32,8], index: 1, kind: input, shape index: {}]
  %s2 = inlined_call_operand.hbm [shape: f32[128,128], index: 2, kind: input, shape index: {}]
  %s3 = inlined_call_operand.vmem [shape: f32[1,128], index: 3, kind: input, shape index: {}]
  %s4 = inlined_call_operand.hbm [shape: f32[128,128], index: 4, kind: input, shape index: {}]
  %s5 = inlined_call_operand.vmem [shape: f32[1,128], index: 5, kind: input, shape index: {}]
  %s6 = inlined_call_operand.hbm [shape: f32[32,128], index: 6, kind: output, shape index: {}]
  %s7 = sld [smem:[#allocation0]]
  $region73: #{tpu_custom_call.1} parent=0
    _
  %s9 = ssub.s32 1, %s7
  %s10 = scalar_select 0, %s9, %s7
  $region1: #{tpu_custom_call.1} parent=0
    #allocation3 [shape = 'u8[131072]{0}', space=vmem, size = 0x20000, scoped, tag = 'input window, operand 0']
    #allocation4 [shape = 's32[2]{0}', space=sflag, size = 0x8, scoped, tag = 'scoped memory for tpu_custom_call.1']
    #allocation5 [shape = 's32[2]{0}', space=sflag, size = 0x8, scoped, tag = 'scoped memory for tpu_custom_call.1']
    #allocation6 [shape = 'u8[65536]{0}', space=vmem, size = 0x10000, scoped, tag = 'input window, operand 2, single buffered']
    #allocation7 [shape = 's32[1]{0}', space=sflag, size = 0x4, scoped, tag = 'scoped memory for tpu_custom_call.1']
    #allocation8 [shape = 'u8[65536]{0}', space=vmem, size = 0x10000, scoped, tag = 'input window, operand 4, single buffered']
    #allocation9 [shape = 'u8[16384]{0}', space=vmem, size = 0x4000, scoped, tag = 'output window, operand 0']
    %11 = vsyncpa [#allocation4], 0
    %s12 = scalar_lea.sflag [#allocation4], 1
    %13 = vsyncpa %s12, 0
    %14 = vsyncpa [#allocation7], 0
    %15 = vsyncpa [#allocation5], 0
    %s16 = scalar_lea.sflag [#allocation5], 1
    %17 = vsyncpa %s16, 0
    loop: start=0, step=1, limit=4
    $region2: #{tpu_custom_call.1} parent=1 // loop_pre_header
      _
    $region3: #{tpu_custom_call.1} parent=1 // loop_header
      %s19 = sphi 0, %s23
      %p20 = scmp.ge.s32.totalorder %s19, 4
      %s26 = sphi 0, %s38
      %s27 = sphi 0, %s34
      %s28 = sphi 0, %s26
      %s29 = sphi 0, %s27
      %s30 = sphi 0, %s28
      %s31 = sphi 0, %s29
      %s41 = sphi 0, %s43
      %s44 = sphi 0, %s41
      %s45 = sphi 0, %s44
      %s61 = sphi 0, %s45
      %s67 = sphi 0, %s69
      %s70 = sphi 0, %s67
      %s71 = sphi 0, %s70
      %s87 = sphi 0, %s71
      %s91 = sphi 0, %s91
      %s93 = sphi 0, %s91
      %s94 = sphi 0, %s93
      %s108 = sphi 0, %s94
      %s112 = sphi 0, %s112
      %s114 = sphi 0, %s112
      %s115 = sphi 0, %s114
      %s129 = sphi 0, %s115
      %s135 = sphi 0, %s137
      %s138 = sphi 0, %s135
      %s139 = sphi 0, %s138
      %s155 = sphi 0, %s139
      %s161 = sphi 0, %s163
      %s164 = sphi 0, %s161
      %s165 = sphi 0, %s164
      %s181 = sphi 0, %s165
      %s189 = sphi 0, %s191
      %s192 = sphi 0, %s189
      %s193 = sphi 0, %s192
      %s209 = sphi 0, %s193
    $region4: #{tpu_custom_call.1} parent=1 // loop_header_branch
      %22 = sbr.rel (%p20) target = $region8
    $region5: #{tpu_custom_call.1} parent=1 // loop_body
      %s24 = ssub.s32 %s19, 1
      %s25 = ssub.s32 %s19, 2
      %s32 = sadd.s32 1, %s27
      %p33 = scmp.ge.s32.totalorder %s32, 1
      %s34 = scalar_select %p33, 0, %s32
      %s35 = sadd.s32 1, %s26
      %s36 = scalar_select %p33, %s35, %s26
      %p37 = scmp.ge.s32.totalorder %s36, 2
      %s38 = scalar_select %p37, 0, %s36
      %s39 = ssub.s32 %s26, %s38
      %p40 = scmp.eq.s32.totalorder %s39, 0
      %s42 = sadd.s32 %s41, 1
      %s43 = scalar_select %p40, %s41, %s42
      %p46 = pneg %p40
      %p47 = scmp.eq.s32.totalorder %s19, 1
      %p48 = por %p46, %p47
      %p49 = scmp.ne.s32.totalorder %s41, %s44
      %p50 = scmp.eq.s32.totalorder %s19, 0
      %p51 = por %p49, %p50
      %p52 = scmp.ne.s32.totalorder %s41, %s44
      %p53 = scmp.eq.s32.totalorder %s24, 1
      %p54 = por %p52, %p53
      %p55 = scmp.ne.s32.totalorder %s44, %s45
      %p56 = scmp.eq.s32.totalorder %s24, 0
      %p57 = por %p55, %p56
      %p58 = scmp.ne.s32.totalorder %s44, %s45
      %p59 = scmp.eq.s32.totalorder %s25, 1
      %p60 = por %p58, %p59
      %p62 = scmp.ne.s32.totalorder %s45, %s61
      %p63 = scmp.eq.s32.totalorder %s25, 0
      %p64 = por %p62, %p63
      %s65 = ssub.s32 %s26, %s38
      %p66 = scmp.eq.s32.totalorder %s65, 0
      %s68 = sadd.s32 %s67, 1
      %s69 = scalar_select %p66, %s67, %s68
      %p72 = pneg %p66
      %p73 = scmp.eq.s32.totalorder %s19, 1
      %p74 = por %p72, %p73
      %p75 = scmp.ne.s32.totalorder %s67, %s70
      %p76 = scmp.eq.s32.totalorder %s19, 0
      %p77 = por %p75, %p76
      %p78 = scmp.ne.s32.totalorder %s67, %s70
      %p79 = scmp.eq.s32.totalorder %s24, 1
      %p80 = por %p78, %p79
      %p81 = scmp.ne.s32.totalorder %s70, %s71
      %p82 = scmp.eq.s32.totalorder %s24, 0
      %p83 = por %p81, %p82
      %p84 = scmp.ne.s32.totalorder %s70, %s71
      %p85 = scmp.eq.s32.totalorder %s25, 1
      %p86 = por %p84, %p85
      %p88 = scmp.ne.s32.totalorder %s71, %s87
      %p89 = scmp.eq.s32.totalorder %s25, 0
      %p90 = por %p88, %p89
      %s92 = sadd.s32 %s91, 1
      %p95 = scmp.eq.s32.totalorder %s19, 1
      %p96 = scmp.ne.s32.totalorder %s91, %s93
      %p97 = scmp.eq.s32.totalorder %s19, 0
      %p98 = por %p96, %p97
      %p99 = scmp.ne.s32.totalorder %s91, %s93
      %p100 = scmp.eq.s32.totalorder %s24, 1
      %p101 = por %p99, %p100
      %p102 = scmp.ne.s32.totalorder %s93, %s94
      %p103 = scmp.eq.s32.totalorder %s24, 0
      %p104 = por %p102, %p103
      %p105 = scmp.ne.s32.totalorder %s93, %s94
      %p106 = scmp.eq.s32.totalorder %s25, 1
      %p107 = por %p105, %p106
      %p109 = scmp.ne.s32.totalorder %s94, %s108
      %p110 = scmp.eq.s32.totalorder %s25, 0
      %p111 = por %p109, %p110
      %s113 = sadd.s32 %s112, 1
      %p116 = scmp.eq.s32.totalorder %s19, 1
      %p117 = scmp.ne.s32.totalorder %s112, %s114
      %p118 = scmp.eq.s32.totalorder %s19, 0
      %p119 = por %p117, %p118
      %p120 = scmp.ne.s32.totalorder %s112, %s114
      %p121 = scmp.eq.s32.totalorder %s24, 1
      %p122 = por %p120, %p121
      %p123 = scmp.ne.s32.totalorder %s114, %s115
      %p124 = scmp.eq.s32.totalorder %s24, 0
      %p125 = por %p123, %p124
      %p126 = scmp.ne.s32.totalorder %s114, %s115
      %p127 = scmp.eq.s32.totalorder %s25, 1
      %p128 = por %p126, %p127
      %p130 = scmp.ne.s32.totalorder %s115, %s129
      %p131 = scmp.eq.s32.totalorder %s25, 0
      %p132 = por %p130, %p131
      %s133 = ssub.s32 %s27, %s34
      %p134 = scmp.eq.s32.totalorder %s133, 0
      %s136 = sadd.s32 %s135, 1
      %s137 = scalar_select %p134, %s135, %s136
      %p140 = pneg %p134
      %p141 = scmp.eq.s32.totalorder %s19, 1
      %p142 = por %p140, %p141
      %p143 = scmp.ne.s32.totalorder %s135, %s138
      %p144 = scmp.eq.s32.totalorder %s19, 0
      %p145 = por %p143, %p144
      %p146 = scmp.ne.s32.totalorder %s135, %s138
      %p147 = scmp.eq.s32.totalorder %s24, 1
      %p148 = por %p146, %p147
      %p149 = scmp.ne.s32.totalorder %s138, %s139
      %p150 = scmp.eq.s32.totalorder %s24, 0
      %p151 = por %p149, %p150
      %p152 = scmp.ne.s32.totalorder %s138, %s139
      %p153 = scmp.eq.s32.totalorder %s25, 1
      %p154 = por %p152, %p153
      %p156 = scmp.ne.s32.totalorder %s139, %s155
      %p157 = scmp.eq.s32.totalorder %s25, 0
      %p158 = por %p156, %p157
      %s159 = ssub.s32 %s27, %s34
      %p160 = scmp.eq.s32.totalorder %s159, 0
      %s162 = sadd.s32 %s161, 1
      %s163 = scalar_select %p160, %s161, %s162
      %p166 = pneg %p160
      %p167 = scmp.eq.s32.totalorder %s19, 1
      %p168 = por %p166, %p167
      %p169 = scmp.ne.s32.totalorder %s161, %s164
      %p170 = scmp.eq.s32.totalorder %s19, 0
      %p171 = por %p169, %p170
      %p172 = scmp.ne.s32.totalorder %s161, %s164
      %p173 = scmp.eq.s32.totalorder %s24, 1
      %p174 = por %p172, %p173
      %p175 = scmp.ne.s32.totalorder %s164, %s165
      %p176 = scmp.eq.s32.totalorder %s24, 0
      %p177 = por %p175, %p176
      %p178 = scmp.ne.s32.totalorder %s164, %s165
      %p179 = scmp.eq.s32.totalorder %s25, 1
      %p180 = por %p178, %p179
      %p182 = scmp.ne.s32.totalorder %s165, %s181
      %p183 = scmp.eq.s32.totalorder %s25, 0
      %p184 = por %p182, %p183
      %s185 = ssub.s32 %s26, %s38
      %s186 = ssub.s32 %s27, %s34
      %s187 = sor.u32 %s185, %s186
      %p188 = scmp.eq.s32.totalorder %s187, 0
      %s190 = sadd.s32 %s189, 1
      %s191 = scalar_select %p188, %s189, %s190
      %p194 = pneg %p188
      %p195 = scmp.eq.s32.totalorder %s19, 1
      %p196 = por %p194, %p195
      %p197 = scmp.ne.s32.totalorder %s189, %s192
      %p198 = scmp.eq.s32.totalorder %s19, 0
      %p199 = por %p197, %p198
      %p200 = scmp.ne.s32.totalorder %s189, %s192
      %p201 = scmp.eq.s32.totalorder %s24, 1
      %p202 = por %p200, %p201
      %p203 = scmp.ne.s32.totalorder %s192, %s193
      %p204 = scmp.eq.s32.totalorder %s24, 0
      %p205 = por %p203, %p204
      %p206 = scmp.ne.s32.totalorder %s192, %s193
      %p207 = scmp.eq.s32.totalorder %s25, 1
      %p208 = por %p206, %p207
      %p210 = scmp.ne.s32.totalorder %s193, %s209
      %p211 = scmp.eq.s32.totalorder %s25, 0
      %p212 = por %p210, %p211
      %p213 = scmp.le.s32.totalorder 1, %s19
      %p214 = scmp.lt.s32.totalorder %s19, 3
      %p215 = pnand %p213, %p214
      %p216 = pneg %p215
      // Predicated region
      $region9: #{tpu_custom_call.1} parent=5 // pred_check
        _
      $region10: #{tpu_custom_call.1} parent=5 // pred_check_branch
        %218 = sbr.rel (%p215) target = $region12
      $region11: #{tpu_custom_call.1} parent=5 // pred_region
        %s219 = ssub.s32 %s19, 1
        // Predicated region
        $region13: #{tpu_custom_call.1} parent=11 // pred_check
          %p220 = pneg %p104
        $region14: #{tpu_custom_call.1} parent=11 // pred_check_branch
          %222 = sbr.rel (%p220) target = $region16
        $region15: #{tpu_custom_call.1} parent=11 // pred_region
          %s224 = ssub.s32 2048, 2048
          %225 = vsyncadd [#allocation7], %s224
          %s226 = sshll.u32 [#allocation6], 4
          %s227 = int_to_ptr.vmem [resolvable:$true] %s226
          %232 = dma.hbm_to_vmem [thread:$0]  %s2, 2048, %s227, [#allocation7], 128, 128, 8
        $region16: #{tpu_custom_call.1} parent=11 // pred_fallthru
          _
        // Predicated region
        $region17: #{tpu_custom_call.1} parent=11 // pred_check
          %p233 = pneg %p125
        $region18: #{tpu_custom_call.1} parent=11 // pred_check_branch
          %235 = sbr.rel (%p233) target = $region20
        $region19: #{tpu_custom_call.1} parent=11 // pred_region
          _
        $region20: #{tpu_custom_call.1} parent=11 // pred_fallthru
          _
        // Predicated region
        $region21: #{tpu_custom_call.1} parent=11 // pred_check
          %p236 = pneg %p151
        $region22: #{tpu_custom_call.1} parent=11 // pred_check_branch
          %238 = sbr.rel (%p236) target = $region24
        $region23: #{tpu_custom_call.1} parent=11 // pred_region
          %s240 = ssub.s32 2048, 2048
          %241 = vsyncadd [#allocation7], %s240
          %s242 = smul.addr %s29, 128
          %s243 = scalar_lea.hbm %s4, %s242
          %s244 = sshll.u32 [#allocation8], 4
          %s245 = int_to_ptr.vmem [resolvable:$true] %s244
          %250 = dma.hbm_to_vmem [thread:$0]  %s243, 2048, %s245, [#allocation7], 128, 128, 8
        $region24: #{tpu_custom_call.1} parent=11 // pred_fallthru
          _
        // Predicated region
        $region25: #{tpu_custom_call.1} parent=11 // pred_check
          %p251 = pneg %p177
        $region26: #{tpu_custom_call.1} parent=11 // pred_check_branch
          %253 = sbr.rel (%p251) target = $region28
        $region27: #{tpu_custom_call.1} parent=11 // pred_region
          %p254 = scmp.lt.s32.totalorder %s29, 0
          %s255 = scalar_select %p254, %s29, 0
          %s256 = scalar_lea.vmem %s5, %s255
        $region28: #{tpu_custom_call.1} parent=11 // pred_fallthru
          _
      $region12: #{tpu_custom_call.1} parent=5 // pred_fallthru
        _
      %p257 = scmp.lt.s32.totalorder %s19, 2
      // Predicated region
      $region29: #{tpu_custom_call.1} parent=5 // pred_check
        %p258 = pneg %p257
      $region30: #{tpu_custom_call.1} parent=5 // pred_check_branch
        %260 = sbr.rel (%p258) target = $region32
      $region31: #{tpu_custom_call.1} parent=5 // pred_region
        // Predicated region
        $region33: #{tpu_custom_call.1} parent=31 // pred_check
          %p261 = pneg %p51
        $region34: #{tpu_custom_call.1} parent=31 // pred_check_branch
          %263 = sbr.rel (%p261) target = $region36
        $region35: #{tpu_custom_call.1} parent=31 // pred_region
          %s264 = sand.u32 %s41, 1
          %s265 = scalar_lea.sflag [#allocation4], %s264
          %s266 = sand.u32 %s41, 1
          %s267 = smul.addr %s266, 128
          %s268 = scalar_lea.vmem [#allocation3], %s267
          %s269 = smul.u32 16, %s26
          %s271 = ssub.s32 2048, 2048
          %272 = vsyncadd %s265, %s271
          %s273 = smul.addr %s269, 128
          %s274 = scalar_lea.hbm %s0, %s273
          %s275 = sshll.u32 %s268, 4
          %s276 = int_to_ptr.vmem [resolvable:$true] %s275
          %281 = dma.hbm_to_vmem [thread:$0]  %s274, 2048, %s276, %s265, 128, 128, 8
        $region36: #{tpu_custom_call.1} parent=31 // pred_fallthru
          _
        // Predicated region
        $region37: #{tpu_custom_call.1} parent=31 // pred_check
          %p282 = pneg %p77
        $region38: #{tpu_custom_call.1} parent=31 // pred_check_branch
          %284 = sbr.rel (%p282) target = $region40
        $region39: #{tpu_custom_call.1} parent=31 // pred_region
          %s285 = smul.u32 2, %s26
          %p286 = scmp.lt.s32.totalorder %s285, 3
          %s287 = scalar_select %p286, %s285, 3
          %s288 = smul.addr %s287, 8
          %s289 = scalar_lea.vmem %s1, %s288
          %s290 = smul.u32 2, %s26
        $region40: #{tpu_custom_call.1} parent=31 // pred_fallthru
          _
      $region32: #{tpu_custom_call.1} parent=5 // pred_fallthru
        _
      %p291 = scmp.le.s32.totalorder 1, %s19
      %p292 = scmp.lt.s32.totalorder %s19, 3
      %p293 = pnand %p291, %p292
      %p294 = pneg %p293
      // Predicated region
      $region41: #{tpu_custom_call.1} parent=5 // pred_check
        _
      $region42: #{tpu_custom_call.1} parent=5 // pred_check_branch
        %296 = sbr.rel (%p293) target = $region44
      $region43: #{tpu_custom_call.1} parent=5 // pred_region
        %s297 = ssub.s32 %s19, 1
        %s298 = sand.u32 %s44, 1
        %s299 = scalar_lea.sflag [#allocation4], %s298
        %s300 = sand.u32 %s44, 1
        %s301 = smul.addr %s300, 128
        %s302 = scalar_lea.vmem [#allocation3], %s301
        // Predicated region
        $region45: #{tpu_custom_call.1} parent=43 // pred_check
          %p303 = pneg %p57
        $region46: #{tpu_custom_call.1} parent=43 // pred_check_branch
          %305 = sbr.rel (%p303) target = $region48
        $region47: #{tpu_custom_call.1} parent=43 // pred_region
          %306 = dma.done %s299, 2048
        $region48: #{tpu_custom_call.1} parent=43 // pred_fallthru
          _
        // Predicated region
        $region49: #{tpu_custom_call.1} parent=43 // pred_check
          %p307 = pneg %p104
        $region50: #{tpu_custom_call.1} parent=43 // pred_check_branch
          %309 = sbr.rel (%p307) target = $region52
        $region51: #{tpu_custom_call.1} parent=43 // pred_region
          %310 = dma.done [#allocation7], 2048
        $region52: #{tpu_custom_call.1} parent=43 // pred_fallthru
          _
        // Predicated region
        $region53: #{tpu_custom_call.1} parent=43 // pred_check
          %p311 = pneg %p151
        $region54: #{tpu_custom_call.1} parent=43 // pred_check_branch
          %313 = sbr.rel (%p311) target = $region56
        $region55: #{tpu_custom_call.1} parent=43 // pred_region
          %314 = dma.done [#allocation7], 2048
        $region56: #{tpu_custom_call.1} parent=43 // pred_fallthru
          _
        %s315 = sand.u32 %s44, 1
        %s316 = scalar_lea.sflag [#allocation4], %s315
        %s317 = sand.u32 %s44, 1
        %s318 = smul.addr %s317, 128
        %s319 = scalar_lea.vmem [#allocation3], %s318
        %p320 = pneg %p57
        %p321 = pneg %p54
        %s322 = smul.u32 2, %s28
        %p323 = scmp.lt.s32.totalorder %s322, 3
        %s324 = scalar_select %p323, %s322, 3
        %s325 = smul.addr %s324, 8
        %s326 = scalar_lea.vmem %s1, %s325
        %p327 = pneg %p83
        %p328 = pneg %p80
        %p329 = pneg %p104
        %p330 = pneg %p101
        %p331 = pneg %p125
        %p332 = pneg %p122
        %p333 = pneg %p151
        %p334 = pneg %p148
        %p335 = scmp.lt.s32.totalorder %s29, 0
        %s336 = scalar_select %p335, %s29, 0
        %s337 = scalar_lea.vmem %s5, %s336
        %p338 = pneg %p177
        %p339 = pneg %p174
        %p340 = pneg %p205
        %p341 = pneg %p202
        %s342 = sand.u32 %s192, 1
        %s343 = scalar_lea.sflag [#allocation5], %s342
        %s344 = sand.u32 %s192, 1
        %s345 = smul.addr %s344, 16
        %s346 = scalar_lea.vmem [#allocation9], %s345
        %s347 = smul.u32 16, %s28
        %s348 = smul.u32 2, %s28
        %p349 = scmp.lt.s32.totalorder %s348, 3
        %s350 = scalar_select %p349, %s348, 3
        %s351 = smul.addr %s350, 8
        %s352 = scalar_lea.vmem %s1, %s351
        %s353 = smul.u32 2, %s28
        %p354 = scmp.lt.s32.totalorder %s29, 0
        %s355 = scalar_select %p354, %s29, 0
        %s356 = scalar_lea.vmem %s5, %s355
        %s357 = smul.u32 2, %s28
        %p358 = scmp.eq.s32.totalorder %s29, 0
        // Predicated region
        $region57: #{tpu_custom_call.1} parent=43 // pred_check
          %p359 = pneg %p358
        $region58: #{tpu_custom_call.1} parent=43 // pred_check_branch
          %361 = sbr.rel (%p359) target = $region60
        $region59: #{tpu_custom_call.1} parent=43 // pred_region
          %v362 = vld [vmem:[%s302] sm:$0xff]
          %v363 = vld [vmem:[%s302 + $0x8] sm:$0xff]
          %v364 = vld [vmem:[%s302 + $0x10] sm:$0xff]
          %v365 = vld [vmem:[%s302 + $0x18] sm:$0xff]
          %v366 = vld [vmem:[%s302 + $0x20] sm:$0xff]
          %v367 = vld [vmem:[%s302 + $0x28] sm:$0xff]
          %v368 = vld [vmem:[%s302 + $0x30] sm:$0xff]
          %v369 = vld [vmem:[%s302 + $0x38] sm:$0xff]
          %v370 = vld [vmem:[%s302 + $0x40] sm:$0xff]
          %v371 = vld [vmem:[%s302 + $0x48] sm:$0xff]
          %v372 = vld [vmem:[%s302 + $0x50] sm:$0xff]
          %v373 = vld [vmem:[%s302 + $0x58] sm:$0xff]
          %v374 = vld [vmem:[%s302 + $0x60] sm:$0xff]
          %v375 = vld [vmem:[%s302 + $0x68] sm:$0xff]
          %v376 = vld [vmem:[%s302 + $0x70] sm:$0xff]
          %v377 = vld [vmem:[%s302 + $0x78] sm:$0xff]
          %v378 = vld [vmem:[#allocation6] sm:$0xff]
          %v379 = vld [vmem:[#allocation6 + $0x8] sm:$0xff]
          %v380 = vld [vmem:[#allocation6 + $0x10] sm:$0xff]
          %v381 = vld [vmem:[#allocation6 + $0x18] sm:$0xff]
          %v382 = vld [vmem:[#allocation6 + $0x20] sm:$0xff]
          %v383 = vld [vmem:[#allocation6 + $0x28] sm:$0xff]
          %v384 = vld [vmem:[#allocation6 + $0x30] sm:$0xff]
          %v385 = vld [vmem:[#allocation6 + $0x38] sm:$0xff]
          %v386 = vld [vmem:[#allocation6 + $0x40] sm:$0xff]
          %v387 = vld [vmem:[#allocation6 + $0x48] sm:$0xff]
          %v388 = vld [vmem:[#allocation6 + $0x50] sm:$0xff]
          %v389 = vld [vmem:[#allocation6 + $0x58] sm:$0xff]
          %v390 = vld [vmem:[#allocation6 + $0x60] sm:$0xff]
          %v391 = vld [vmem:[#allocation6 + $0x68] sm:$0xff]
          %v392 = vld [vmem:[#allocation6 + $0x70] sm:$0xff]
          %v393 = vld [vmem:[#allocation6 + $0x78] sm:$0xff]
          %394 = vmatprep.subr.mxu0 0.0
          %395 = vmatpush1.msra.mxu0 %v393
          %396 = vmatprep.subr.mxu0 0.0
          %397 = vmatpush1.msra.mxu0 %v392
          %398 = vmatprep.subr.mxu0 0.0
          %399 = vmatpush1.msra.mxu0 %v391
          %400 = vmatprep.subr.mxu0 0.0
          %401 = vmatpush1.msra.mxu0 %v390
          %402 = vmatprep.subr.mxu0 0.0
          %403 = vmatpush1.msra.mxu0 %v389
          %404 = vmatprep.subr.mxu0 0.0
          %405 = vmatpush1.msra.mxu0 %v388
          %406 = vmatprep.subr.mxu0 0.0
          %407 = vmatpush1.msra.mxu0 %v387
          %408 = vmatprep.subr.mxu0 0.0
          %409 = vmatpush1.msra.mxu0 %v386
          %410 = vmatprep.subr.mxu0 0.0
          %411 = vmatpush1.msra.mxu0 %v385
          %412 = vmatprep.subr.mxu0 0.0
          %413 = vmatpush1.msra.mxu0 %v384
          %414 = vmatprep.subr.mxu0 0.0
          %415 = vmatpush1.msra.mxu0 %v383
          %416 = vmatprep.subr.mxu0 0.0
          %417 = vmatpush1.msra.mxu0 %v382
          %418 = vmatprep.subr.mxu0 0.0
          %419 = vmatpush1.msra.mxu0 %v381
          %420 = vmatprep.subr.mxu0 0.0
          %421 = vmatpush1.msra.mxu0 %v380
          %422 = vmatprep.subr.mxu0 0.0
          %423 = vmatpush1.msra.mxu0 %v379
          %424 = vmatprep.subr.mxu0 0.0
          %425 = vmatpush1.msra.mxu0 %v378
          %426 = vmatprep.subr.mxu0 0.0
          %427 = vmatpush2.msra.mxu0 0.0
          %428 = vmatprep.subr.mxu0 0.0
          %429 = vmatpush2.msra.mxu0 0.0
          %430 = vmatprep.subr.mxu0 0.0
          %431 = vmatpush2.msra.mxu0 0.0
          %432 = vmatprep.subr.mxu0 0.0
          %433 = vmatpush2.msra.mxu0 0.0
          %434 = vmatprep.subr.mxu0 0.0
          %435 = vmatpush2.msra.mxu0 0.0
          %436 = vmatprep.subr.mxu0 0.0
          %437 = vmatpush2.msra.mxu0 0.0
          %438 = vmatprep.subr.mxu0 0.0
          %439 = vmatpush2.msra.mxu0 0.0
          %440 = vmatprep.subr.mxu0 0.0
          %441 = vmatpush2.msra.mxu0 0.0
          %442 = vmatprep.subr.mxu0 0.0
          %443 = vmatpush2.msra.mxu0 0.0
          %444 = vmatprep.subr.mxu0 0.0
          %445 = vmatpush2.msra.mxu0 0.0
          %446 = vmatprep.subr.mxu0 0.0
          %447 = vmatpush2.msra.mxu0 0.0
          %448 = vmatprep.subr.mxu0 0.0
          %449 = vmatpush2.msra.mxu0 0.0
          %450 = vmatprep.subr.mxu0 0.0
          %451 = vmatpush2.msra.mxu0 0.0
          %452 = vmatprep.subr.mxu0 0.0
          %453 = vmatpush2.msra.mxu0 0.0
          %454 = vmatprep.subr.mxu0 0.0
          %455 = vmatpush2.msra.mxu0 0.0
          %456 = vmatprep.subr.mxu0 0.0
          %457 = vmatpush2.msra.mxu0 0.0
          %458 = vmatprep.mubr.f32.mxu0 0.0
          %459 = vmatmul.mubr.f32.gmra.mxu0 %v362
          %v460 = vpop.f32.mrf.mxu0
          %v461 = vadd.f32 0.0, %v460
          %v462 = vpop.f32.mrf.mxu0
          %463 = vmatprep.mubr.f32.mxu0 0.0
          %464 = vmatmul.mubr.f32.gmra.mxu0 %v363
          %v465 = vpop.f32.mrf.mxu0
          %v466 = vadd.f32 0.0, %v465
          %v467 = vpop.f32.mrf.mxu0
          %468 = vmatprep.mubr.f32.mxu0 0.0
          %469 = vmatmul.mubr.f32.gmra.mxu0 %v364
          %v470 = vpop.f32.mrf.mxu0
          %v471 = vadd.f32 0.0, %v470
          %v472 = vpop.f32.mrf.mxu0
          %473 = vmatprep.mubr.f32.mxu0 0.0
          %474 = vmatmul.mubr.f32.gmra.mxu0 %v365
          %v475 = vpop.f32.mrf.mxu0
          %v476 = vadd.f32 0.0, %v475
          %v477 = vpop.f32.mrf.mxu0
          %478 = vmatprep.mubr.f32.mxu0 0.0
          %479 = vmatmul.mubr.f32.gmra.mxu0 %v366
          %v480 = vpop.f32.mrf.mxu0
          %v481 = vadd.f32 0.0, %v480
          %v482 = vpop.f32.mrf.mxu0
          %483 = vmatprep.mubr.f32.mxu0 0.0
          %484 = vmatmul.mubr.f32.gmra.mxu0 %v367
          %v485 = vpop.f32.mrf.mxu0
          %v486 = vadd.f32 0.0, %v485
          %v487 = vpop.f32.mrf.mxu0
          %488 = vmatprep.mubr.f32.mxu0 0.0
          %489 = vmatmul.mubr.f32.gmra.mxu0 %v368
          %v490 = vpop.f32.mrf.mxu0
          %v491 = vadd.f32 0.0, %v490
          %v492 = vpop.f32.mrf.mxu0
          %493 = vmatprep.mubr.f32.mxu0 0.0
          %494 = vmatmul.mubr.f32.gmra.mxu0 %v369
          %v495 = vpop.f32.mrf.mxu0
          %v496 = vadd.f32 0.0, %v495
          %v497 = vpop.f32.mrf.mxu0
          %498 = vmatprep.mubr.f32.mxu0 0.0
          %499 = vmatmul.mubr.f32.gmra.mxu0 %v370
          %v500 = vpop.f32.mrf.mxu0
          %v501 = vadd.f32 0.0, %v500
          %v502 = vpop.f32.mrf.mxu0
          %503 = vmatprep.mubr.f32.mxu0 0.0
          %504 = vmatmul.mubr.f32.gmra.mxu0 %v371
          %v505 = vpop.f32.mrf.mxu0
          %v506 = vadd.f32 0.0, %v505
          %v507 = vpop.f32.mrf.mxu0
          %508 = vmatprep.mubr.f32.mxu0 0.0
          %509 = vmatmul.mubr.f32.gmra.mxu0 %v372
          %v510 = vpop.f32.mrf.mxu0
          %v511 = vadd.f32 0.0, %v510
          %v512 = vpop.f32.mrf.mxu0
          %513 = vmatprep.mubr.f32.mxu0 0.0
          %514 = vmatmul.mubr.f32.gmra.mxu0 %v373
          %v515 = vpop.f32.mrf.mxu0
          %v516 = vadd.f32 0.0, %v515
          %v517 = vpop.f32.mrf.mxu0
          %518 = vmatprep.mubr.f32.mxu0 0.0
          %519 = vmatmul.mubr.f32.gmra.mxu0 %v374
          %v520 = vpop.f32.mrf.mxu0
          %v521 = vadd.f32 0.0, %v520
          %v522 = vpop.f32.mrf.mxu0
          %523 = vmatprep.mubr.f32.mxu0 0.0
          %524 = vmatmul.mubr.f32.gmra.mxu0 %v375
          %v525 = vpop.f32.mrf.mxu0
          %v526 = vadd.f32 0.0, %v525
          %v527 = vpop.f32.mrf.mxu0
          %528 = vmatprep.mubr.f32.mxu0 0.0
          %529 = vmatmul.mubr.f32.gmra.mxu0 %v376
          %v530 = vpop.f32.mrf.mxu0
          %v531 = vadd.f32 0.0, %v530
          %v532 = vpop.f32.mrf.mxu0
          %533 = vmatprep.mubr.f32.mxu0 0.0
          %534 = vmatmul.mubr.f32.gmra.mxu0 %v377
          %v535 = vpop.f32.mrf.mxu0
          %v536 = vadd.f32 0.0, %v535
          %v537 = vpop.f32.mrf.mxu0
          %538 = vdwg.mxu0
          %v539 = vtanh.pop %v461
          %v540 = vtanh.pop %v466
          %v541 = vtanh.pop %v471
          %v542 = vtanh.pop %v476
          %v543 = vtanh.pop %v481
          %v544 = vtanh.pop %v486
          %v545 = vtanh.pop %v491
          %v546 = vtanh.pop %v496
          %v547 = vtanh.pop %v501
          %v548 = vtanh.pop %v506
          %v549 = vtanh.pop %v511
          %v550 = vtanh.pop %v516
          %v551 = vtanh.pop %v521
          %v552 = vtanh.pop %v526
          %v553 = vtanh.pop %v531
          %v554 = vtanh.pop %v536
          %v555 = vld [vmem:[%s3] sm:$0x1]
          %v557 = vlaneseq
          %v558 = vshrl.u32 %v557, 7
          %v559 = vsub.s32 0, %v558
          %v560 = vrot.slane %v555, %v559
          %v562 = vmul.f32 %v539, %v560
          %v563 = vmul.f32 %v540, %v560
          %v564 = vmul.f32 %v541, %v560
          %v565 = vmul.f32 %v542, %v560
          %v566 = vmul.f32 %v543, %v560
          %v567 = vmul.f32 %v544, %v560
          %v568 = vmul.f32 %v545, %v560
          %v569 = vmul.f32 %v546, %v560
          %v570 = vmul.f32 %v547, %v560
          %v571 = vmul.f32 %v548, %v560
          %v572 = vmul.f32 %v549, %v560
          %v573 = vmul.f32 %v550, %v560
          %v574 = vmul.f32 %v551, %v560
          %v575 = vmul.f32 %v552, %v560
          %v576 = vmul.f32 %v553, %v560
          %v577 = vmul.f32 %v554, %v560
          %578 = vadd.xlane.f32.xlu0 %v562
          %v579 = vpop.xlane.xlu0 %578
          %580 = vadd.xlane.f32.xlu0 %v563
          %v581 = vpop.xlane.xlu0 %580
          %582 = vadd.xlane.f32.xlu0 %v564
          %v583 = vpop.xlane.xlu0 %582
          %584 = vadd.xlane.f32.xlu0 %v565
          %v585 = vpop.xlane.xlu0 %584
          %586 = vadd.xlane.f32.xlu0 %v566
          %v587 = vpop.xlane.xlu0 %586
          %588 = vadd.xlane.f32.xlu0 %v567
          %v589 = vpop.xlane.xlu0 %588
          %590 = vadd.xlane.f32.xlu0 %v568
          %v591 = vpop.xlane.xlu0 %590
          %592 = vadd.xlane.f32.xlu0 %v569
          %v593 = vpop.xlane.xlu0 %592
          %594 = vadd.xlane.f32.xlu0 %v570
          %v595 = vpop.xlane.xlu0 %594
          %596 = vadd.xlane.f32.xlu0 %v571
          %v597 = vpop.xlane.xlu0 %596
          %598 = vadd.xlane.f32.xlu0 %v572
          %v599 = vpop.xlane.xlu0 %598
          %600 = vadd.xlane.f32.xlu0 %v573
          %v601 = vpop.xlane.xlu0 %600
          %602 = vadd.xlane.f32.xlu0 %v574
          %v603 = vpop.xlane.xlu0 %602
          %604 = vadd.xlane.f32.xlu0 %v575
          %v605 = vpop.xlane.xlu0 %604
          %606 = vadd.xlane.f32.xlu0 %v576
          %v607 = vpop.xlane.xlu0 %606
          %608 = vadd.xlane.f32.xlu0 %v577
          %v609 = vpop.xlane.xlu0 %608
          %v610 = vld [vmem:[%s352] sm:$0xff]
          %v611 = vld [vmem:[%s352 + $0x8] sm:$0xff]
          %v614 = vlaneseq
          %v615 = vshrl.u32 %v614, 7
          %v616 = vsub.s32 0, %v615
          %v617 = vrot.slane %v610, %v616
          %619 = vbcast.lane.b32.xlu0 %v617, 256
          %v620 = vpop.permute.xlu0 %619
          %v621 = vlaneseq
          %v622 = vshrl.u32 %v621, 7
          %v623 = vsub.s32 1, %v622
          %v624 = vrot.slane %v610, %v623
          %626 = vbcast.lane.b32.xlu0 %v624, 256
          %v627 = vpop.permute.xlu0 %626
          %v628 = vlaneseq
          %v629 = vshrl.u32 %v628, 7
          %v630 = vsub.s32 2, %v629
          %v631 = vrot.slane %v610, %v630
          %633 = vbcast.lane.b32.xlu0 %v631, 256
          %v634 = vpop.permute.xlu0 %633
          %v635 = vlaneseq
          %v636 = vshrl.u32 %v635, 7
          %v637 = vsub.s32 3, %v636
          %v638 = vrot.slane %v610, %v637
          %640 = vbcast.lane.b32.xlu0 %v638, 256
          %v641 = vpop.permute.xlu0 %640
          %v642 = vlaneseq
          %v643 = vshrl.u32 %v642, 7
          %v644 = vsub.s32 4, %v643
          %v645 = vrot.slane %v610, %v644
          %647 = vbcast.lane.b32.xlu0 %v645, 256
          %v648 = vpop.permute.xlu0 %647
          %v649 = vlaneseq
          %v650 = vshrl.u32 %v649, 7
          %v651 = vsub.s32 5, %v650
          %v652 = vrot.slane %v610, %v651
          %654 = vbcast.lane.b32.xlu0 %v652, 256
          %v655 = vpop.permute.xlu0 %654
          %v656 = vlaneseq
          %v657 = vshrl.u32 %v656, 7
          %v658 = vsub.s32 6, %v657
          %v659 = vrot.slane %v610, %v658
          %661 = vbcast.lane.b32.xlu0 %v659, 256
          %v662 = vpop.permute.xlu0 %661
          %v663 = vlaneseq
          %v664 = vshrl.u32 %v663, 7
          %v665 = vsub.s32 7, %v664
          %v666 = vrot.slane %v610, %v665
          %668 = vbcast.lane.b32.xlu0 %v666, 256
          %v669 = vpop.permute.xlu0 %668
          %v670 = vlaneseq
          %v671 = vshrl.u32 %v670, 7
          %v672 = vsub.s32 0, %v671
          %v673 = vrot.slane %v611, %v672
          %675 = vbcast.lane.b32.xlu0 %v673, 256
          %v676 = vpop.permute.xlu0 %675
          %v677 = vlaneseq
          %v678 = vshrl.u32 %v677, 7
          %v679 = vsub.s32 1, %v678
          %v680 = vrot.slane %v611, %v679
          %682 = vbcast.lane.b32.xlu0 %v680, 256
          %v683 = vpop.permute.xlu0 %682
          %v684 = vlaneseq
          %v685 = vshrl.u32 %v684, 7
          %v686 = vsub.s32 2, %v685
          %v687 = vrot.slane %v611, %v686
          %689 = vbcast.lane.b32.xlu0 %v687, 256
          %v690 = vpop.permute.xlu0 %689
          %v691 = vlaneseq
          %v692 = vshrl.u32 %v691, 7
          %v693 = vsub.s32 3, %v692
          %v694 = vrot.slane %v611, %v693
          %696 = vbcast.lane.b32.xlu0 %v694, 256
          %v697 = vpop.permute.xlu0 %696
          %v698 = vlaneseq
          %v699 = vshrl.u32 %v698, 7
          %v700 = vsub.s32 4, %v699
          %v701 = vrot.slane %v611, %v700
          %703 = vbcast.lane.b32.xlu0 %v701, 256
          %v704 = vpop.permute.xlu0 %703
          %v705 = vlaneseq
          %v706 = vshrl.u32 %v705, 7
          %v707 = vsub.s32 5, %v706
          %v708 = vrot.slane %v611, %v707
          %710 = vbcast.lane.b32.xlu0 %v708, 256
          %v711 = vpop.permute.xlu0 %710
          %v712 = vlaneseq
          %v713 = vshrl.u32 %v712, 7
          %v714 = vsub.s32 6, %v713
          %v715 = vrot.slane %v611, %v714
          %717 = vbcast.lane.b32.xlu0 %v715, 256
          %v718 = vpop.permute.xlu0 %717
          %v719 = vlaneseq
          %v720 = vshrl.u32 %v719, 7
          %v721 = vsub.s32 7, %v720
          %v722 = vrot.slane %v611, %v721
          %724 = vbcast.lane.b32.xlu0 %v722, 256
          %v725 = vpop.permute.xlu0 %724
          %v742 = vadd.f32 %v579, %v620
          %v743 = vadd.f32 %v581, %v627
          %v744 = vadd.f32 %v583, %v634
          %v745 = vadd.f32 %v585, %v641
          %v746 = vadd.f32 %v587, %v648
          %v747 = vadd.f32 %v589, %v655
          %v748 = vadd.f32 %v591, %v662
          %v749 = vadd.f32 %v593, %v669
          %v750 = vadd.f32 %v595, %v676
          %v751 = vadd.f32 %v597, %v683
          %v752 = vadd.f32 %v599, %v690
          %v753 = vadd.f32 %v601, %v697
          %v754 = vadd.f32 %v603, %v704
          %v755 = vadd.f32 %v605, %v711
          %v756 = vadd.f32 %v607, %v718
          %v757 = vadd.f32 %v609, %v725
          %774 = vset.pattern.permute.xlu0 0
          %775 = vperm.xlu0 %774, %v742
          %v776 = vpop.permute.xlu0 %775
          %777 = vset.pattern.permute.xlu0 0
          %778 = vperm.xlu0 %777, %v743
          %v779 = vpop.permute.xlu0 %778
          %780 = vset.pattern.permute.xlu0 0
          %781 = vperm.xlu0 %780, %v744
          %v782 = vpop.permute.xlu0 %781
          %783 = vset.pattern.permute.xlu0 0
          %784 = vperm.xlu0 %783, %v745
          %v785 = vpop.permute.xlu0 %784
          %786 = vset.pattern.permute.xlu0 0
          %787 = vperm.xlu0 %786, %v746
          %v788 = vpop.permute.xlu0 %787
          %789 = vset.pattern.permute.xlu0 0
          %790 = vperm.xlu0 %789, %v747
          %v791 = vpop.permute.xlu0 %790
          %792 = vset.pattern.permute.xlu0 0
          %793 = vperm.xlu0 %792, %v748
          %v794 = vpop.permute.xlu0 %793
          %795 = vset.pattern.permute.xlu0 0
          %796 = vperm.xlu0 %795, %v749
          %v797 = vpop.permute.xlu0 %796
          %798 = vset.pattern.permute.xlu0 0
          %799 = vperm.xlu0 %798, %v750
          %v800 = vpop.permute.xlu0 %799
          %801 = vset.pattern.permute.xlu0 0
          %802 = vperm.xlu0 %801, %v751
          %v803 = vpop.permute.xlu0 %802
          %804 = vset.pattern.permute.xlu0 0
          %805 = vperm.xlu0 %804, %v752
          %v806 = vpop.permute.xlu0 %805
          %807 = vset.pattern.permute.xlu0 0
          %808 = vperm.xlu0 %807, %v753
          %v809 = vpop.permute.xlu0 %808
          %810 = vset.pattern.permute.xlu0 0
          %811 = vperm.xlu0 %810, %v754
          %v812 = vpop.permute.xlu0 %811
          %813 = vset.pattern.permute.xlu0 0
          %814 = vperm.xlu0 %813, %v755
          %v815 = vpop.permute.xlu0 %814
          %816 = vset.pattern.permute.xlu0 0
          %817 = vperm.xlu0 %816, %v756
          %v818 = vpop.permute.xlu0 %817
          %819 = vset.pattern.permute.xlu0 0
          %820 = vperm.xlu0 %819, %v757
          %v821 = vpop.permute.xlu0 %820
          %v822 = vlaneseq
          %v823 = vand.u32 %v822, 127
          %v824 = vlaneseq
          %v825 = vshrl.u32 %v824, 7
          %v826 = vsub.s32 %v823, %v825
          %v827 = vrot.slane %v776, %v826
          %v828 = vlaneseq
          %v829 = vshrl.u32 %v828, 7
          %v830 = vsub.s32 %v823, %v829
          %v831 = vrot.slane %v779, %v830
          %v832 = vlaneseq
          %v833 = vshrl.u32 %v832, 7
          %v834 = vsub.s32 %v823, %v833
          %v835 = vrot.slane %v782, %v834
          %v836 = vlaneseq
          %v837 = vshrl.u32 %v836, 7
          %v838 = vsub.s32 %v823, %v837
          %v839 = vrot.slane %v785, %v838
          %v840 = vlaneseq
          %v841 = vshrl.u32 %v840, 7
          %v842 = vsub.s32 %v823, %v841
          %v843 = vrot.slane %v788, %v842
          %v844 = vlaneseq
          %v845 = vshrl.u32 %v844, 7
          %v846 = vsub.s32 %v823, %v845
          %v847 = vrot.slane %v791, %v846
          %v848 = vlaneseq
          %v849 = vshrl.u32 %v848, 7
          %v850 = vsub.s32 %v823, %v849
          %v851 = vrot.slane %v794, %v850
          %v852 = vlaneseq
          %v853 = vshrl.u32 %v852, 7
          %v854 = vsub.s32 %v823, %v853
          %v855 = vrot.slane %v797, %v854
          %v856 = vlaneseq
          %v857 = vshrl.u32 %v856, 7
          %v858 = vsub.s32 %v823, %v857
          %v859 = vrot.slane %v800, %v858
          %v860 = vlaneseq
          %v861 = vshrl.u32 %v860, 7
          %v862 = vsub.s32 %v823, %v861
          %v863 = vrot.slane %v803, %v862
          %v864 = vlaneseq
          %v865 = vshrl.u32 %v864, 7
          %v866 = vsub.s32 %v823, %v865
          %v867 = vrot.slane %v806, %v866
          %v868 = vlaneseq
          %v869 = vshrl.u32 %v868, 7
          %v870 = vsub.s32 %v823, %v869
          %v871 = vrot.slane %v809, %v870
          %v872 = vlaneseq
          %v873 = vshrl.u32 %v872, 7
          %v874 = vsub.s32 %v823, %v873
          %v875 = vrot.slane %v812, %v874
          %v876 = vlaneseq
          %v877 = vshrl.u32 %v876, 7
          %v878 = vsub.s32 %v823, %v877
          %v879 = vrot.slane %v815, %v878
          %v880 = vlaneseq
          %v881 = vshrl.u32 %v880, 7
          %v882 = vsub.s32 %v823, %v881
          %v883 = vrot.slane %v818, %v882
          %v884 = vlaneseq
          %v885 = vshrl.u32 %v884, 7
          %v886 = vsub.s32 %v823, %v885
          %v887 = vrot.slane %v821, %v886
          %vm888 = vcmask 1041409
          %v889 = vsel %vm888, %v831, %v827
          %vm890 = vcmask 1042434
          %v891 = vsel %vm890, %v835, %v889
          %vm892 = vcmask 1043459
          %v893 = vsel %vm892, %v839, %v891
          %vm894 = vcmask 1044484
          %v895 = vsel %vm894, %v843, %v893
          %vm896 = vcmask 1045509
          %v897 = vsel %vm896, %v847, %v895
          %vm898 = vcmask 1046534
          %v899 = vsel %vm898, %v851, %v897
          %vm900 = vcmask 1047559
          %v901 = vsel %vm900, %v855, %v899
          %v902 = vsel %vm888, %v863, %v859
          %v903 = vsel %vm890, %v867, %v902
          %v904 = vsel %vm892, %v871, %v903
          %v905 = vsel %vm894, %v875, %v904
          %v906 = vsel %vm896, %v879, %v905
          %v907 = vsel %vm898, %v883, %v906
          %v908 = vsel %vm900, %v887, %v907
          %vm911 = vcmask 64512
          %v912 = vsel %vm911, %v901, -inf
          %913 = vmax.xlane.f32.xlu0 %v912
          %v914 = vpop.xlane.xlu0 %913
          %v915 = vsel %vm911, %v908, -inf
          %916 = vmax.xlane.f32.xlu0 %v915
          %v917 = vpop.xlane.xlu0 %916
          %v920 = vlaneseq
          %v921 = vshrl.u32 %v920, 7
          %v922 = vsub.s32 0, %v921
          %v923 = vrot.slane %v914, %v922
          %v924 = vlaneseq
          %v925 = vshrl.u32 %v924, 7
          %v926 = vsub.s32 1, %v925
          %v927 = vrot.slane %v914, %v926
          %v928 = vlaneseq
          %v929 = vshrl.u32 %v928, 7
          %v930 = vsub.s32 2, %v929
          %v931 = vrot.slane %v914, %v930
          %v932 = vlaneseq
          %v933 = vshrl.u32 %v932, 7
          %v934 = vsub.s32 3, %v933
          %v935 = vrot.slane %v914, %v934
          %v936 = vlaneseq
          %v937 = vshrl.u32 %v936, 7
          %v938 = vsub.s32 4, %v937
          %v939 = vrot.slane %v914, %v938
          %v940 = vlaneseq
          %v941 = vshrl.u32 %v940, 7
          %v942 = vsub.s32 5, %v941
          %v943 = vrot.slane %v914, %v942
          %v944 = vlaneseq
          %v945 = vshrl.u32 %v944, 7
          %v946 = vsub.s32 6, %v945
          %v947 = vrot.slane %v914, %v946
          %v948 = vlaneseq
          %v949 = vshrl.u32 %v948, 7
          %v950 = vsub.s32 7, %v949
          %v951 = vrot.slane %v914, %v950
          %v952 = vlaneseq
          %v953 = vshrl.u32 %v952, 7
          %v954 = vsub.s32 0, %v953
          %v955 = vrot.slane %v917, %v954
          %v956 = vlaneseq
          %v957 = vshrl.u32 %v956, 7
          %v958 = vsub.s32 1, %v957
          %v959 = vrot.slane %v917, %v958
          %v960 = vlaneseq
          %v961 = vshrl.u32 %v960, 7
          %v962 = vsub.s32 2, %v961
          %v963 = vrot.slane %v917, %v962
          %v964 = vlaneseq
          %v965 = vshrl.u32 %v964, 7
          %v966 = vsub.s32 3, %v965
          %v967 = vrot.slane %v917, %v966
          %v968 = vlaneseq
          %v969 = vshrl.u32 %v968, 7
          %v970 = vsub.s32 4, %v969
          %v971 = vrot.slane %v917, %v970
          %v972 = vlaneseq
          %v973 = vshrl.u32 %v972, 7
          %v974 = vsub.s32 5, %v973
          %v975 = vrot.slane %v917, %v974
          %v976 = vlaneseq
          %v977 = vshrl.u32 %v976, 7
          %v978 = vsub.s32 6, %v977
          %v979 = vrot.slane %v917, %v978
          %v980 = vlaneseq
          %v981 = vshrl.u32 %v980, 7
          %v982 = vsub.s32 7, %v981
          %v983 = vrot.slane %v917, %v982
          %v1000 = vsub.f32 %v742, %v923
          %v1001 = vsub.f32 %v743, %v927
          %v1002 = vsub.f32 %v744, %v931
          %v1003 = vsub.f32 %v745, %v935
          %v1004 = vsub.f32 %v746, %v939
          %v1005 = vsub.f32 %v747, %v943
          %v1006 = vsub.f32 %v748, %v947
          %v1007 = vsub.f32 %v749, %v951
          %v1008 = vsub.f32 %v750, %v955
          %v1009 = vsub.f32 %v751, %v959
          %v1010 = vsub.f32 %v752, %v963
          %v1011 = vsub.f32 %v753, %v967
          %v1012 = vsub.f32 %v754, %v971
          %v1013 = vsub.f32 %v755, %v975
          %v1014 = vsub.f32 %v756, %v979
          %v1015 = vsub.f32 %v757, %v983
          %v1016 = vmul.f32 %v1000, 1.442695
          %v1017 = vpow.pop %v1016
          %v1018 = vmul.f32 %v1001, 1.442695
          %v1019 = vpow.pop %v1018
          %v1020 = vmul.f32 %v1002, 1.442695
          %v1021 = vpow.pop %v1020
          %v1022 = vmul.f32 %v1003, 1.442695
          %v1023 = vpow.pop %v1022
          %v1024 = vmul.f32 %v1004, 1.442695
          %v1025 = vpow.pop %v1024
          %v1026 = vmul.f32 %v1005, 1.442695
          %v1027 = vpow.pop %v1026
          %v1028 = vmul.f32 %v1006, 1.442695
          %v1029 = vpow.pop %v1028
          %v1030 = vmul.f32 %v1007, 1.442695
          %v1031 = vpow.pop %v1030
          %v1032 = vmul.f32 %v1008, 1.442695
          %v1033 = vpow.pop %v1032
          %v1034 = vmul.f32 %v1009, 1.442695
          %v1035 = vpow.pop %v1034
          %v1036 = vmul.f32 %v1010, 1.442695
          %v1037 = vpow.pop %v1036
          %v1038 = vmul.f32 %v1011, 1.442695
          %v1039 = vpow.pop %v1038
          %v1040 = vmul.f32 %v1012, 1.442695
          %v1041 = vpow.pop %v1040
          %v1042 = vmul.f32 %v1013, 1.442695
          %v1043 = vpow.pop %v1042
          %v1044 = vmul.f32 %v1014, 1.442695
          %v1045 = vpow.pop %v1044
          %v1046 = vmul.f32 %v1015, 1.442695
          %v1047 = vpow.pop %v1046
          %1064 = vset.pattern.permute.xlu0 0
          %1065 = vperm.xlu0 %1064, %v1017
          %v1066 = vpop.permute.xlu0 %1065
          %1067 = vset.pattern.permute.xlu0 0
          %1068 = vperm.xlu0 %1067, %v1019
          %v1069 = vpop.permute.xlu0 %1068
          %1070 = vset.pattern.permute.xlu0 0
          %1071 = vperm.xlu0 %1070, %v1021
          %v1072 = vpop.permute.xlu0 %1071
          %1073 = vset.pattern.permute.xlu0 0
          %1074 = vperm.xlu0 %1073, %v1023
          %v1075 = vpop.permute.xlu0 %1074
          %1076 = vset.pattern.permute.xlu0 0
          %1077 = vperm.xlu0 %1076, %v1025
          %v1078 = vpop.permute.xlu0 %1077
          %1079 = vset.pattern.permute.xlu0 0
          %1080 = vperm.xlu0 %1079, %v1027
          %v1081 = vpop.permute.xlu0 %1080
          %1082 = vset.pattern.permute.xlu0 0
          %1083 = vperm.xlu0 %1082, %v1029
          %v1084 = vpop.permute.xlu0 %1083
          %1085 = vset.pattern.permute.xlu0 0
          %1086 = vperm.xlu0 %1085, %v1031
          %v1087 = vpop.permute.xlu0 %1086
          %1088 = vset.pattern.permute.xlu0 0
          %1089 = vperm.xlu0 %1088, %v1033
          %v1090 = vpop.permute.xlu0 %1089
          %1091 = vset.pattern.permute.xlu0 0
          %1092 = vperm.xlu0 %1091, %v1035
          %v1093 = vpop.permute.xlu0 %1092
          %1094 = vset.pattern.permute.xlu0 0
          %1095 = vperm.xlu0 %1094, %v1037
          %v1096 = vpop.permute.xlu0 %1095
          %1097 = vset.pattern.permute.xlu0 0
          %1098 = vperm.xlu0 %1097, %v1039
          %v1099 = vpop.permute.xlu0 %1098
          %1100 = vset.pattern.permute.xlu0 0
          %1101 = vperm.xlu0 %1100, %v1041
          %v1102 = vpop.permute.xlu0 %1101
          %1103 = vset.pattern.permute.xlu0 0
          %1104 = vperm.xlu0 %1103, %v1043
          %v1105 = vpop.permute.xlu0 %1104
          %1106 = vset.pattern.permute.xlu0 0
          %1107 = vperm.xlu0 %1106, %v1045
          %v1108 = vpop.permute.xlu0 %1107
          %1109 = vset.pattern.permute.xlu0 0
          %1110 = vperm.xlu0 %1109, %v1047
          %v1111 = vpop.permute.xlu0 %1110
          %v1112 = vlaneseq
          %v1113 = vshrl.u32 %v1112, 7
          %v1114 = vsub.s32 %v823, %v1113
          %v1115 = vrot.slane %v1066, %v1114
          %v1116 = vlaneseq
          %v1117 = vshrl.u32 %v1116, 7
          %v1118 = vsub.s32 %v823, %v1117
          %v1119 = vrot.slane %v1069, %v1118
          %v1120 = vlaneseq
          %v1121 = vshrl.u32 %v1120, 7
          %v1122 = vsub.s32 %v823, %v1121
          %v1123 = vrot.slane %v1072, %v1122
          %v1124 = vlaneseq
          %v1125 = vshrl.u32 %v1124, 7
          %v1126 = vsub.s32 %v823, %v1125
          %v1127 = vrot.slane %v1075, %v1126
          %v1128 = vlaneseq
          %v1129 = vshrl.u32 %v1128, 7
          %v1130 = vsub.s32 %v823, %v1129
          %v1131 = vrot.slane %v1078, %v1130
          %v1132 = vlaneseq
          %v1133 = vshrl.u32 %v1132, 7
          %v1134 = vsub.s32 %v823, %v1133
          %v1135 = vrot.slane %v1081, %v1134
          %v1136 = vlaneseq
          %v1137 = vshrl.u32 %v1136, 7
          %v1138 = vsub.s32 %v823, %v1137
          %v1139 = vrot.slane %v1084, %v1138
          %v1140 = vlaneseq
          %v1141 = vshrl.u32 %v1140, 7
          %v1142 = vsub.s32 %v823, %v1141
          %v1143 = vrot.slane %v1087, %v1142
          %v1144 = vlaneseq
          %v1145 = vshrl.u32 %v1144, 7
          %v1146 = vsub.s32 %v823, %v1145
          %v1147 = vrot.slane %v1090, %v1146
          %v1148 = vlaneseq
          %v1149 = vshrl.u32 %v1148, 7
          %v1150 = vsub.s32 %v823, %v1149
          %v1151 = vrot.slane %v1093, %v1150
          %v1152 = vlaneseq
          %v1153 = vshrl.u32 %v1152, 7
          %v1154 = vsub.s32 %v823, %v1153
          %v1155 = vrot.slane %v1096, %v1154
          %v1156 = vlaneseq
          %v1157 = vshrl.u32 %v1156, 7
          %v1158 = vsub.s32 %v823, %v1157
          %v1159 = vrot.slane %v1099, %v1158
          %v1160 = vlaneseq
          %v1161 = vshrl.u32 %v1160, 7
          %v1162 = vsub.s32 %v823, %v1161
          %v1163 = vrot.slane %v1102, %v1162
          %v1164 = vlaneseq
          %v1165 = vshrl.u32 %v1164, 7
          %v1166 = vsub.s32 %v823, %v1165
          %v1167 = vrot.slane %v1105, %v1166
          %v1168 = vlaneseq
          %v1169 = vshrl.u32 %v1168, 7
          %v1170 = vsub.s32 %v823, %v1169
          %v1171 = vrot.slane %v1108, %v1170
          %v1172 = vlaneseq
          %v1173 = vshrl.u32 %v1172, 7
          %v1174 = vsub.s32 %v823, %v1173
          %v1175 = vrot.slane %v1111, %v1174
          %v1176 = vsel %vm888, %v1119, %v1115
          %v1177 = vsel %vm890, %v1123, %v1176
          %v1178 = vsel %vm892, %v1127, %v1177
          %v1179 = vsel %vm894, %v1131, %v1178
          %v1180 = vsel %vm896, %v1135, %v1179
          %v1181 = vsel %vm898, %v1139, %v1180
          %v1182 = vsel %vm900, %v1143, %v1181
          %v1183 = vsel %vm888, %v1151, %v1147
          %v1184 = vsel %vm890, %v1155, %v1183
          %v1185 = vsel %vm892, %v1159, %v1184
          %v1186 = vsel %vm894, %v1163, %v1185
          %v1187 = vsel %vm896, %v1167, %v1186
          %v1188 = vsel %vm898, %v1171, %v1187
          %v1189 = vsel %vm900, %v1175, %v1188
          %v1192 = vsel %vm911, %v1182, 0.0
          %1193 = vadd.xlane.f32.xlu0 %v1192
          %v1194 = vpop.xlane.xlu0 %1193
          %v1195 = vsel %vm911, %v1189, 0.0
          %1196 = vadd.xlane.f32.xlu0 %v1195
          %v1197 = vpop.xlane.xlu0 %1196
          %v1198 = vrcp.pop %v1194
          %v1199 = vrcp.pop %v1197
          %v1202 = vlaneseq
          %v1203 = vshrl.u32 %v1202, 7
          %v1204 = vsub.s32 0, %v1203
          %v1205 = vrot.slane %v1198, %v1204
          %v1206 = vlaneseq
          %v1207 = vshrl.u32 %v1206, 7
          %v1208 = vsub.s32 1, %v1207
          %v1209 = vrot.slane %v1198, %v1208
          %v1210 = vlaneseq
          %v1211 = vshrl.u32 %v1210, 7
          %v1212 = vsub.s32 2, %v1211
          %v1213 = vrot.slane %v1198, %v1212
          %v1214 = vlaneseq
          %v1215 = vshrl.u32 %v1214, 7
          %v1216 = vsub.s32 3, %v1215
          %v1217 = vrot.slane %v1198, %v1216
          %v1218 = vlaneseq
          %v1219 = vshrl.u32 %v1218, 7
          %v1220 = vsub.s32 4, %v1219
          %v1221 = vrot.slane %v1198, %v1220
          %v1222 = vlaneseq
          %v1223 = vshrl.u32 %v1222, 7
          %v1224 = vsub.s32 5, %v1223
          %v1225 = vrot.slane %v1198, %v1224
          %v1226 = vlaneseq
          %v1227 = vshrl.u32 %v1226, 7
          %v1228 = vsub.s32 6, %v1227
          %v1229 = vrot.slane %v1198, %v1228
          %v1230 = vlaneseq
          %v1231 = vshrl.u32 %v1230, 7
          %v1232 = vsub.s32 7, %v1231
          %v1233 = vrot.slane %v1198, %v1232
          %v1234 = vlaneseq
          %v1235 = vshrl.u32 %v1234, 7
          %v1236 = vsub.s32 0, %v1235
          %v1237 = vrot.slane %v1199, %v1236
          %v1238 = vlaneseq
          %v1239 = vshrl.u32 %v1238, 7
          %v1240 = vsub.s32 1, %v1239
          %v1241 = vrot.slane %v1199, %v1240
          %v1242 = vlaneseq
          %v1243 = vshrl.u32 %v1242, 7
          %v1244 = vsub.s32 2, %v1243
          %v1245 = vrot.slane %v1199, %v1244
          %v1246 = vlaneseq
          %v1247 = vshrl.u32 %v1246, 7
          %v1248 = vsub.s32 3, %v1247
          %v1249 = vrot.slane %v1199, %v1248
          %v1250 = vlaneseq
          %v1251 = vshrl.u32 %v1250, 7
          %v1252 = vsub.s32 4, %v1251
          %v1253 = vrot.slane %v1199, %v1252
          %v1254 = vlaneseq
          %v1255 = vshrl.u32 %v1254, 7
          %v1256 = vsub.s32 5, %v1255
          %v1257 = vrot.slane %v1199, %v1256
          %v1258 = vlaneseq
          %v1259 = vshrl.u32 %v1258, 7
          %v1260 = vsub.s32 6, %v1259
          %v1261 = vrot.slane %v1199, %v1260
          %v1262 = vlaneseq
          %v1263 = vshrl.u32 %v1262, 7
          %v1264 = vsub.s32 7, %v1263
          %v1265 = vrot.slane %v1199, %v1264
          %v1282 = vmul.f32 %v1017, %v1205
          %v1283 = vmul.f32 %v1019, %v1209
          %v1284 = vmul.f32 %v1021, %v1213
          %v1285 = vmul.f32 %v1023, %v1217
          %v1286 = vmul.f32 %v1025, %v1221
          %v1287 = vmul.f32 %v1027, %v1225
          %v1288 = vmul.f32 %v1029, %v1229
          %v1289 = vmul.f32 %v1031, %v1233
          %v1290 = vmul.f32 %v1033, %v1237
          %v1291 = vmul.f32 %v1035, %v1241
          %v1292 = vmul.f32 %v1037, %v1245
          %v1293 = vmul.f32 %v1039, %v1249
          %v1294 = vmul.f32 %v1041, %v1253
          %v1295 = vmul.f32 %v1043, %v1257
          %v1296 = vmul.f32 %v1045, %v1261
          %v1297 = vmul.f32 %v1047, %v1265
          %1299 = vset.pattern.permute.xlu0 0
          %1300 = vperm.xlu0 %1299, %v1282
          %v1301 = vpop.permute.xlu0 %1300
          %1304 = vset.pattern.permute.xlu0 0
          %1305 = vperm.xlu0 %1304, %v1283
          %v1306 = vpop.permute.xlu0 %1305
          %1309 = vset.pattern.permute.xlu0 0
          %1310 = vperm.xlu0 %1309, %v1284
          %v1311 = vpop.permute.xlu0 %1310
          %1314 = vset.pattern.permute.xlu0 0
          %1315 = vperm.xlu0 %1314, %v1285
          %v1316 = vpop.permute.xlu0 %1315
          %1319 = vset.pattern.permute.xlu0 0
          %1320 = vperm.xlu0 %1319, %v1286
          %v1321 = vpop.permute.xlu0 %1320
          %1324 = vset.pattern.permute.xlu0 0
          %1325 = vperm.xlu0 %1324, %v1287
          %v1326 = vpop.permute.xlu0 %1325
          %1329 = vset.pattern.permute.xlu0 0
          %1330 = vperm.xlu0 %1329, %v1288
          %v1331 = vpop.permute.xlu0 %1330
          %1334 = vset.pattern.permute.xlu0 0
          %1335 = vperm.xlu0 %1334, %v1289
          %v1336 = vpop.permute.xlu0 %1335
          %1339 = vset.pattern.permute.xlu0 0
          %1340 = vperm.xlu0 %1339, %v1290
          %v1341 = vpop.permute.xlu0 %1340
          %1344 = vset.pattern.permute.xlu0 0
          %1345 = vperm.xlu0 %1344, %v1291
          %v1346 = vpop.permute.xlu0 %1345
          %1349 = vset.pattern.permute.xlu0 0
          %1350 = vperm.xlu0 %1349, %v1292
          %v1351 = vpop.permute.xlu0 %1350
          %1354 = vset.pattern.permute.xlu0 0
          %1355 = vperm.xlu0 %1354, %v1293
          %v1356 = vpop.permute.xlu0 %1355
          %1359 = vset.pattern.permute.xlu0 0
          %1360 = vperm.xlu0 %1359, %v1294
          %v1361 = vpop.permute.xlu0 %1360
          %1364 = vset.pattern.permute.xlu0 0
          %1365 = vperm.xlu0 %1364, %v1295
          %v1366 = vpop.permute.xlu0 %1365
          %1369 = vset.pattern.permute.xlu0 0
          %1370 = vperm.xlu0 %1369, %v1296
          %v1371 = vpop.permute.xlu0 %1370
          %1374 = vset.pattern.permute.xlu0 0
          %1375 = vperm.xlu0 %1374, %v1297
          %v1376 = vpop.permute.xlu0 %1375
          %v1378 = vmul.f32 %v539, %v1301
          %v1379 = vmul.f32 %v540, %v1306
          %v1380 = vmul.f32 %v541, %v1311
          %v1381 = vmul.f32 %v542, %v1316
          %v1382 = vmul.f32 %v543, %v1321
          %v1383 = vmul.f32 %v544, %v1326
          %v1384 = vmul.f32 %v545, %v1331
          %v1385 = vmul.f32 %v546, %v1336
          %v1386 = vmul.f32 %v547, %v1341
          %v1387 = vmul.f32 %v548, %v1346
          %v1388 = vmul.f32 %v549, %v1351
          %v1389 = vmul.f32 %v550, %v1356
          %v1390 = vmul.f32 %v551, %v1361
          %v1391 = vmul.f32 %v552, %v1366
          %v1392 = vmul.f32 %v553, %v1371
          %v1393 = vmul.f32 %v554, %v1376
          %v1394 = vrot.slane %v1378, 4
          %v1395 = vadd.f32 %v1378, %v1394
          %v1396 = vrot.slane %v1395, 2
          %v1397 = vadd.f32 %v1395, %v1396
          %v1398 = vrot.slane %v1397, 1
          %v1399 = vadd.f32 %v1397, %v1398
          %v1400 = vrot.slane %v1379, 4
          %v1401 = vadd.f32 %v1379, %v1400
          %v1402 = vrot.slane %v1401, 2
          %v1403 = vadd.f32 %v1401, %v1402
          %v1404 = vrot.slane %v1403, 1
          %v1405 = vadd.f32 %v1403, %v1404
          %v1406 = vrot.slane %v1380, 4
          %v1407 = vadd.f32 %v1380, %v1406
          %v1408 = vrot.slane %v1407, 2
          %v1409 = vadd.f32 %v1407, %v1408
          %v1410 = vrot.slane %v1409, 1
          %v1411 = vadd.f32 %v1409, %v1410
          %v1412 = vrot.slane %v1381, 4
          %v1413 = vadd.f32 %v1381, %v1412
          %v1414 = vrot.slane %v1413, 2
          %v1415 = vadd.f32 %v1413, %v1414
          %v1416 = vrot.slane %v1415, 1
          %v1417 = vadd.f32 %v1415, %v1416
          %v1418 = vrot.slane %v1382, 4
          %v1419 = vadd.f32 %v1382, %v1418
          %v1420 = vrot.slane %v1419, 2
          %v1421 = vadd.f32 %v1419, %v1420
          %v1422 = vrot.slane %v1421, 1
          %v1423 = vadd.f32 %v1421, %v1422
          %v1424 = vrot.slane %v1383, 4
          %v1425 = vadd.f32 %v1383, %v1424
          %v1426 = vrot.slane %v1425, 2
          %v1427 = vadd.f32 %v1425, %v1426
          %v1428 = vrot.slane %v1427, 1
          %v1429 = vadd.f32 %v1427, %v1428
          %v1430 = vrot.slane %v1384, 4
          %v1431 = vadd.f32 %v1384, %v1430
          %v1432 = vrot.slane %v1431, 2
          %v1433 = vadd.f32 %v1431, %v1432
          %v1434 = vrot.slane %v1433, 1
          %v1435 = vadd.f32 %v1433, %v1434
          %v1436 = vrot.slane %v1385, 4
          %v1437 = vadd.f32 %v1385, %v1436
          %v1438 = vrot.slane %v1437, 2
          %v1439 = vadd.f32 %v1437, %v1438
          %v1440 = vrot.slane %v1439, 1
          %v1441 = vadd.f32 %v1439, %v1440
          %v1442 = vrot.slane %v1386, 4
          %v1443 = vadd.f32 %v1386, %v1442
          %v1444 = vrot.slane %v1443, 2
          %v1445 = vadd.f32 %v1443, %v1444
          %v1446 = vrot.slane %v1445, 1
          %v1447 = vadd.f32 %v1445, %v1446
          %v1448 = vrot.slane %v1387, 4
          %v1449 = vadd.f32 %v1387, %v1448
          %v1450 = vrot.slane %v1449, 2
          %v1451 = vadd.f32 %v1449, %v1450
          %v1452 = vrot.slane %v1451, 1
          %v1453 = vadd.f32 %v1451, %v1452
          %v1454 = vrot.slane %v1388, 4
          %v1455 = vadd.f32 %v1388, %v1454
          %v1456 = vrot.slane %v1455, 2
          %v1457 = vadd.f32 %v1455, %v1456
          %v1458 = vrot.slane %v1457, 1
          %v1459 = vadd.f32 %v1457, %v1458
          %v1460 = vrot.slane %v1389, 4
          %v1461 = vadd.f32 %v1389, %v1460
          %v1462 = vrot.slane %v1461, 2
          %v1463 = vadd.f32 %v1461, %v1462
          %v1464 = vrot.slane %v1463, 1
          %v1465 = vadd.f32 %v1463, %v1464
          %v1466 = vrot.slane %v1390, 4
          %v1467 = vadd.f32 %v1390, %v1466
          %v1468 = vrot.slane %v1467, 2
          %v1469 = vadd.f32 %v1467, %v1468
          %v1470 = vrot.slane %v1469, 1
          %v1471 = vadd.f32 %v1469, %v1470
          %v1472 = vrot.slane %v1391, 4
          %v1473 = vadd.f32 %v1391, %v1472
          %v1474 = vrot.slane %v1473, 2
          %v1475 = vadd.f32 %v1473, %v1474
          %v1476 = vrot.slane %v1475, 1
          %v1477 = vadd.f32 %v1475, %v1476
          %v1478 = vrot.slane %v1392, 4
          %v1479 = vadd.f32 %v1392, %v1478
          %v1480 = vrot.slane %v1479, 2
          %v1481 = vadd.f32 %v1479, %v1480
          %v1482 = vrot.slane %v1481, 1
          %v1483 = vadd.f32 %v1481, %v1482
          %v1484 = vrot.slane %v1393, 4
          %v1485 = vadd.f32 %v1393, %v1484
          %v1486 = vrot.slane %v1485, 2
          %v1487 = vadd.f32 %v1485, %v1486
          %v1488 = vrot.slane %v1487, 1
          %v1489 = vadd.f32 %v1487, %v1488
          %v1506 = vsel %vm888, %v1405, %v1399
          %v1507 = vsel %vm890, %v1411, %v1506
          %v1508 = vsel %vm892, %v1417, %v1507
          %v1509 = vsel %vm894, %v1423, %v1508
          %v1510 = vsel %vm896, %v1429, %v1509
          %v1511 = vsel %vm898, %v1435, %v1510
          %v1512 = vsel %vm900, %v1441, %v1511
          %v1513 = vsel %vm888, %v1453, %v1447
          %v1514 = vsel %vm890, %v1459, %v1513
          %v1515 = vsel %vm892, %v1465, %v1514
          %v1516 = vsel %vm894, %v1471, %v1515
          %v1517 = vsel %vm896, %v1477, %v1516
          %v1518 = vsel %vm898, %v1483, %v1517
          %v1519 = vsel %vm900, %v1489, %v1518
          %1522 = vst [vmem:[#allocation2] sm:$0xff] %v1512
          %1523 = vst [vmem:[#allocation2 + $0x8] sm:$0xff] %v1519
        $region60: #{tpu_custom_call.1} parent=43 // pred_fallthru
          _
        %v1524 = vld [vmem:[#allocation2] sm:$0xff]
        %v1525 = vld [vmem:[#allocation2 + $0x8] sm:$0xff]
        %v1526 = vld [vmem:[#allocation8] sm:$0xff]
        %v1527 = vld [vmem:[#allocation8 + $0x8] sm:$0xff]
        %v1528 = vld [vmem:[#allocation8 + $0x10] sm:$0xff]
        %v1529 = vld [vmem:[#allocation8 + $0x18] sm:$0xff]
        %v1530 = vld [vmem:[#allocation8 + $0x20] sm:$0xff]
        %v1531 = vld [vmem:[#allocation8 + $0x28] sm:$0xff]
        %v1532 = vld [vmem:[#allocation8 + $0x30] sm:$0xff]
        %v1533 = vld [vmem:[#allocation8 + $0x38] sm:$0xff]
        %v1534 = vld [vmem:[#allocation8 + $0x40] sm:$0xff]
        %v1535 = vld [vmem:[#allocation8 + $0x48] sm:$0xff]
        %v1536 = vld [vmem:[#allocation8 + $0x50] sm:$0xff]
        %v1537 = vld [vmem:[#allocation8 + $0x58] sm:$0xff]
        %v1538 = vld [vmem:[#allocation8 + $0x60] sm:$0xff]
        %v1539 = vld [vmem:[#allocation8 + $0x68] sm:$0xff]
        %v1540 = vld [vmem:[#allocation8 + $0x70] sm:$0xff]
        %v1541 = vld [vmem:[#allocation8 + $0x78] sm:$0xff]
        %v1542 = vld [vmem:[%s356] sm:$0x1]
        %v1544 = vlaneseq
        %v1545 = vshrl.u32 %v1544, 7
        %v1546 = vsub.s32 0, %v1545
        %v1547 = vrot.slane %v1542, %v1546
        %1549 = vmatprep.subr.mxu0 0.0
        %1550 = vmatpush1.msra.mxu0 %v1541
        %1551 = vmatprep.subr.mxu0 0.0
        %1552 = vmatpush1.msra.mxu0 %v1540
        %1553 = vmatprep.subr.mxu0 0.0
        %1554 = vmatpush1.msra.mxu0 %v1539
        %1555 = vmatprep.subr.mxu0 0.0
        %1556 = vmatpush1.msra.mxu0 %v1538
        %1557 = vmatprep.subr.mxu0 0.0
        %1558 = vmatpush1.msra.mxu0 %v1537
        %1559 = vmatprep.subr.mxu0 0.0
        %1560 = vmatpush1.msra.mxu0 %v1536
        %1561 = vmatprep.subr.mxu0 0.0
        %1562 = vmatpush1.msra.mxu0 %v1535
        %1563 = vmatprep.subr.mxu0 0.0
        %1564 = vmatpush1.msra.mxu0 %v1534
        %1565 = vmatprep.subr.mxu0 0.0
        %1566 = vmatpush1.msra.mxu0 %v1533
        %1567 = vmatprep.subr.mxu0 0.0
        %1568 = vmatpush1.msra.mxu0 %v1532
        %1569 = vmatprep.subr.mxu0 0.0
        %1570 = vmatpush1.msra.mxu0 %v1531
        %1571 = vmatprep.subr.mxu0 0.0
        %1572 = vmatpush1.msra.mxu0 %v1530
        %1573 = vmatprep.subr.mxu0 0.0
        %1574 = vmatpush1.msra.mxu0 %v1529
        %1575 = vmatprep.subr.mxu0 0.0
        %1576 = vmatpush1.msra.mxu0 %v1528
        %1577 = vmatprep.subr.mxu0 0.0
        %1578 = vmatpush1.msra.mxu0 %v1527
        %1579 = vmatprep.subr.mxu0 0.0
        %1580 = vmatpush1.msra.mxu0 %v1526
        %1581 = vmatprep.subr.mxu0 0.0
        %1582 = vmatpush2.msra.mxu0 0.0
        %1583 = vmatprep.subr.mxu0 0.0
        %1584 = vmatpush2.msra.mxu0 0.0
        %1585 = vmatprep.subr.mxu0 0.0
        %1586 = vmatpush2.msra.mxu0 0.0
        %1587 = vmatprep.subr.mxu0 0.0
        %1588 = vmatpush2.msra.mxu0 0.0
        %1589 = vmatprep.subr.mxu0 0.0
        %1590 = vmatpush2.msra.mxu0 0.0
        %1591 = vmatprep.subr.mxu0 0.0
        %1592 = vmatpush2.msra.mxu0 0.0
        %1593 = vmatprep.subr.mxu0 0.0
        %1594 = vmatpush2.msra.mxu0 0.0
        %1595 = vmatprep.subr.mxu0 0.0
        %1596 = vmatpush2.msra.mxu0 0.0
        %1597 = vmatprep.subr.mxu0 0.0
        %1598 = vmatpush2.msra.mxu0 0.0
        %1599 = vmatprep.subr.mxu0 0.0
        %1600 = vmatpush2.msra.mxu0 0.0
        %1601 = vmatprep.subr.mxu0 0.0
        %1602 = vmatpush2.msra.mxu0 0.0
        %1603 = vmatprep.subr.mxu0 0.0
        %1604 = vmatpush2.msra.mxu0 0.0
        %1605 = vmatprep.subr.mxu0 0.0
        %1606 = vmatpush2.msra.mxu0 0.0
        %1607 = vmatprep.subr.mxu0 0.0
        %1608 = vmatpush2.msra.mxu0 0.0
        %1609 = vmatprep.subr.mxu0 0.0
        %1610 = vmatpush2.msra.mxu0 0.0
        %1611 = vmatprep.subr.mxu0 0.0
        %1612 = vmatpush2.msra.mxu0 0.0
        %1613 = vmatprep.mubr.f32.mxu0 0.0
        %1614 = vmatmul.mubr.f32.gmra.mxu0 %v1524
        %v1615 = vpop.f32.mrf.mxu0
        %v1616 = vadd.f32 %v1547, %v1615
        %v1617 = vpop.f32.mrf.mxu0
        %1618 = vmatprep.mubr.f32.mxu0 0.0
        %1619 = vmatmul.mubr.f32.gmra.mxu0 %v1525
        %v1620 = vpop.f32.mrf.mxu0
        %v1621 = vadd.f32 %v1547, %v1620
        %v1622 = vpop.f32.mrf.mxu0
        %1623 = vdwg.mxu0
        %1624 = vst [vmem:[%s346] sm:$0xff] %v1616
        %1625 = vst [vmem:[%s346 + $0x8] sm:$0xff] %v1621
        %s1626 = sand.u32 %s192, 1
        %s1627 = scalar_lea.sflag [#allocation5], %s1626
        %s1628 = sand.u32 %s192, 1
        %s1629 = smul.addr %s1628, 16
        %s1630 = scalar_lea.vmem [#allocation9], %s1629
        // Predicated region
        $region61: #{tpu_custom_call.1} parent=43 // pred_check
          %p1631 = pneg %p202
        $region62: #{tpu_custom_call.1} parent=43 // pred_check_branch
          %1633 = sbr.rel (%p1631) target = $region64
        $region63: #{tpu_custom_call.1} parent=43 // pred_region
          %s1634 = smul.u32 2, %s28
          %s1636 = ssub.s32 256, 256
          %1637 = vsyncadd %s1627, %s1636
          %s1638 = sadd.s32 %s29, %s1634
          %s1639 = smul.addr %s1638, 128
          %s1640 = scalar_lea.hbm %s6, %s1639
          %s1641 = sshll.u32 %s1630, 4
          %s1642 = int_to_ptr.vmem [resolvable:$true] %s1641
          %1647 = dma.vmem_to_hbm [thread:$0]  %s1642, 256, %s1640, %s1627, 128, 128, 8
        $region64: #{tpu_custom_call.1} parent=43 // pred_fallthru
          _
      $region44: #{tpu_custom_call.1} parent=5 // pred_fallthru
        _
      %p1648 = scmp.le.s32.totalorder 2, %s19
      // Predicated region
      $region65: #{tpu_custom_call.1} parent=5 // pred_check
        %p1649 = pneg %p1648
      $region66: #{tpu_custom_call.1} parent=5 // pred_check_branch
        %1651 = sbr.rel (%p1649) target = $region68
      $region67: #{tpu_custom_call.1} parent=5 // pred_region
        %s1652 = ssub.s32 %s19, 2
        // Predicated region
        $region69: #{tpu_custom_call.1} parent=67 // pred_check
          %p1653 = pneg %p208
        $region70: #{tpu_custom_call.1} parent=67 // pred_check_branch
          %1655 = sbr.rel (%p1653) target = $region72
        $region71: #{tpu_custom_call.1} parent=67 // pred_region
          %s1656 = sand.u32 %s193, 1
          %s1657 = scalar_lea.sflag [#allocation5], %s1656
          %s1658 = sand.u32 %s193, 1
          %s1659 = smul.addr %s1658, 16
          %s1660 = scalar_lea.vmem [#allocation9], %s1659
          %1661 = dma.done %s1657, 256
        $region72: #{tpu_custom_call.1} parent=67 // pred_fallthru
          _
      $region68: #{tpu_custom_call.1} parent=5 // pred_fallthru
        _
    $region6: #{tpu_custom_call.1} parent=1 // loop_footer
      %s23 = sadd.s32 1, %s19
    $region7: #{tpu_custom_call.1} parent=1 // loop_footer_branch
      %18 = sbr.rel target = $region3
    $region8: #{tpu_custom_call.1} parent=1 // loop_exit
      _
    %1662 = vsyncpa [#allocation4], 1
    %s1663 = scalar_lea.sflag [#allocation4], 1
    %1664 = vsyncpa %s1663, 1
    %1665 = vsyncpa [#allocation7], 1
    %1666 = vsyncpa [#allocation5], 1
    %s1667 = scalar_lea.sflag [#allocation5], 1
    %1668 = vsyncpa %s1667, 1

</llo_original>
